<compile_context>
chip_gen: v7x
topology: tpu7x:2x2x1
jax: 0.10.0
libtpu: 0.0.40
codegen_flags: <defaults>
</compile_context>

<pallas_src>
import functools
import numpy as np

import jax
import jax.numpy as jnp
from jax import lax
from jax.experimental import pallas as pl
from jax.experimental.pallas import tpu as pltpu

_BN_EPS = 1e-5


def _vmem_budget_bytes():
    # Conservative per-core budget: ~75% of physical VMEM, capped at 48 MiB so
    # the same tiling stays safe on v7x (64 MiB/TC) as well as v5e/v6e.
    try:
        cap = int(pltpu.get_tpu_info().vmem_capacity_bytes)
    except Exception:
        cap = 64 * 1024 * 1024
    return min(cap * 3 // 4, 48 * 1024 * 1024)


# ------------------------------ fused kernel --------------------------------

def _fused_kernel(*refs, stride, th, expand, residual, w_img):
    """One (batch, row-tile) grid step.

    expand 1x1 + BN + ReLU6  ->  depthwise 3x3 + BN + ReLU6
    ->  project 1x1 + BN (+ residual).

    Both 1x1 convs are single batched MXU matmuls over the whole tile.
    stride-2 subsampling (rows and columns) is folded in via strided reads,
    and the residual is the interior of the already-resident padded input.
    """
    idx = 0
    xp_ref = refs[idx]; idx += 1                       # (1, Hp, Wp, Cin) padded
    if expand:
        w1_ref = refs[idx]; b1_ref = refs[idx + 1]; idx += 2
    k_ref = refs[idx]; b2_ref = refs[idx + 1]          # (3,3,Chid), (1,Chid)
    w2_ref = refs[idx + 2]; b3_ref = refs[idx + 3]     # (Chid,Cout), (1,Cout)
    idx += 4
    o_ref = refs[idx]; idx += 1                        # (1, th, Wo, Cout)
    h_scr = refs[idx] if expand else None              # (in_rows, Wp, Chid) f32

    hp, wp, cin = xp_ref.shape[1], xp_ref.shape[2], xp_ref.shape[3]
    chid = k_ref.shape[2]
    cout = w2_ref.shape[1]
    wo = w_img if stride == 1 else (w_img - 1) // 2 + 1
    in_rows = stride * (th - 1) + 3                    # padded input rows needed

    j = pl.program_id(1)
    row0 = stride * th * j                             # first padded-input row

    # ---- stage 1: expand 1x1 + BN + ReLU6 (ONE batched MXU matmul) ----------
    if expand:
        xt = xp_ref[0, pl.ds(row0, in_rows), :, :]     # (in_rows, Wp, Cin)
        x2d = xt.reshape(in_rows * wp, cin)            # layout-preserving (Wp%8==0)
        h2d = jnp.dot(x2d, w1_ref[...], preferred_element_type=jnp.float32)
        h2d = jnp.clip(h2d + b1_ref[...], 0.0, 6.0)
        h3 = h2d.reshape(in_rows, wp, chid)
        # Conv zero-padding semantically applies to the *hidden* activations:
        # zero the halo columns everywhere, halo rows only on edge tiles.
        ci = lax.broadcasted_iota(jnp.int32, (wp, chid), 0)
        col_keep = jnp.where(jnp.logical_and(ci >= 1, ci <= w_img), 1.0, 0.0)
        h_scr[...] = h3 * col_keep

        @pl.when(row0 == 0)
        def _():                                       # window includes top pad row
            h_scr[0] = jnp.zeros((wp, chid), jnp.float32)

        @pl.when(row0 + in_rows == hp)
        def _():                                       # window includes bottom pad row
            h_scr[in_rows - 1] = jnp.zeros((wp, chid), jnp.float32)

    # ---- stage 2: depthwise 3x3 + BN + ReLU6 over the whole tile ------------
    def tap(kh, kw):
        if expand:
            if stride == 1:
                return h_scr[pl.ds(kh, th), pl.ds(kw, wo), :]
            return h_scr[pl.ds(kh, th, stride=2), pl.ds(kw, wo, stride=2), :]
        # expand_ratio == 1: read the (zero-padded) input directly, no copy.
        if stride == 1:
            t = xp_ref[0, pl.ds(row0 + kh, th), pl.ds(kw, wo), :]
        else:
            t = xp_ref[0, pl.ds(row0 + kh, th, stride=2),
                       pl.ds(kw, wo, stride=2), :]
        return t.astype(jnp.float32)

    acc = jnp.zeros((th, wo, chid), jnp.float32)
    for kh in range(3):                                # 9 static taps (VPU)
        for kw in range(3):
            acc = acc + tap(kh, kw) * k_ref[kh, kw]
    # TODO(synk): replace the kw=1,2 misaligned sublane slices with
    # pltpu.roll-based taps so every read stays (8,128)-aligned.
    y = jnp.clip(acc + b2_ref[...], 0.0, 6.0)          # (th, Wo, Chid)

    # ---- stage 3: project 1x1 + BN (+ residual), ONE batched matmul ---------
    y2d = y.reshape(th * wo, chid)
    out2d = jnp.dot(y2d, w2_ref[...], preferred_element_type=jnp.float32)
    out = (out2d + b3_ref[...]).reshape(th, wo, cout)
    if residual:
        # Residual = interior of the resident padded input (stride 1, Cin==Cout).
        out = out + xp_ref[0, pl.ds(row0 + 1, th),
                           pl.ds(1, w_img), :].astype(jnp.float32)
    o_ref[0] = out.astype(o_ref.dtype)


# ------------------------------ pallas wrapper -------------------------------

def inverted_residual_block(x, params, *, stride, expand, residual, out_dtype):
    """x: NHWC input (N, H, W, Cin).  Returns NHWC output (N, Ho, Wo, Cout)."""
    n, h, w, cin = x.shape
    ho = (h - 1) // stride + 1
    wo = (w - 1) // stride + 1
    chid = params["dwk"].shape[2]
    cout = params["w2"].shape[1]

    # 1-px zero halo; right-pad the width so the padded width is a multiple of
    # 8 (keeps the in-kernel tile<->2D reshapes layout-preserving).
    hp = h + 2
    wp = (w + 2) + ((-(w + 2)) % 8)
    xp = jnp.pad(x, ((0, 0), (1, 1), (1, wp - w - 1), (0, 0)))

    in_bytes = jnp.dtype(xp.dtype).itemsize
    out_bytes = jnp.dtype(out_dtype).itemsize
    budget = _vmem_budget_bytes()
    w_elems = ((cin * chid + chid) if expand else 0) \
        + 9 * chid + chid + chid * cout + cout

    def need_for(th):
        in_rows = stride * (th - 1) + 3
        return (2 * hp * wp * cin * in_bytes            # resident padded input (x2 bufs)
                + 2 * th * wo * cout * out_bytes        # output tile (x2 bufs)
                + 2 * w_elems * 4                       # weights / biases (x2 bufs)
                + (in_rows * wp * chid * 4 if expand else 0)   # hidden scratch
                + (2 << 20))                            # compiler-scratch slack

    # Largest divisor of Ho whose footprint fits the budget: maximizes the
    # matmul M dimension and minimizes per-grid-step overhead.
    th = 1
    for cand in range(ho, 0, -1):
        if ho % cand == 0 and need_for(cand) <= budget:
            th = cand
            break
    n_tiles = ho // th
    in_rows = stride * (th - 1) + 3
    need = need_for(th)

    operands = [xp]
    # Full padded image stays VMEM-resident across a batch element's row tiles
    # (block index independent of jb); weights pinned with constant index maps.
    in_specs = [pl.BlockSpec((1, hp, wp, cin), lambda nb, jb: (nb, 0, 0, 0))]
    if expand:
        operands += [params["w1"], params["b1"]]
        in_specs += [pl.BlockSpec((cin, chid), lambda nb, jb: (0, 0)),
                     pl.BlockSpec((1, chid), lambda nb, jb: (0, 0))]
    operands += [params["dwk"], params["b2"], params["w2"], params["b3"]]
    in_specs += [pl.BlockSpec((3, 3, chid), lambda nb, jb: (0, 0, 0)),
                 pl.BlockSpec((1, chid), lambda nb, jb: (0, 0)),
                 pl.BlockSpec((chid, cout), lambda nb, jb: (0, 0)),
                 pl.BlockSpec((1, cout), lambda nb, jb: (0, 0))]

    out_spec = pl.BlockSpec((1, th, wo, cout), lambda nb, jb: (nb, jb, 0, 0))
    scratch = ([pltpu.VMEM((in_rows, wp, chid), jnp.float32)] if expand else [])

    vmem_limit = int(min(budget, max(32 * 1024 * 1024, 2 * need)))

    kernel = functools.partial(_fused_kernel, stride=stride, th=th,
                               expand=expand, residual=residual, w_img=w)
    return pl.pallas_call(
        kernel,
        out_shape=jax.ShapeDtypeStruct((n, ho, wo, cout), out_dtype),
        grid=(n, n_tiles),
        in_specs=in_specs,
        out_specs=out_spec,
        scratch_shapes=scratch,
        compiler_params=pltpu.CompilerParams(
            dimension_semantics=("parallel", "arbitrary"),
            vmem_limit_bytes=vmem_limit),
    )(*operands)


# ------------------------------ module wrapper -------------------------------

def _bn_fold(gamma, beta, mean, var):
    scale = gamma / jnp.sqrt(var + _BN_EPS)
    bias = beta - mean * scale
    return scale, bias


class InvertedResidualPallas:
    """JAX/Pallas port of the PyTorch InvertedResidual block (eval-mode BN)."""

    def __init__(self, inp, oup, stride, expand_ratio, key):
        assert stride in (1, 2)
        self.inp, self.oup, self.stride = inp, oup, stride
        self.expand_ratio = expand_ratio
        self.hidden = int(round(inp * expand_ratio))
        self.use_res_connect = (stride == 1 and inp == oup)

        def bn_params(k, c):
            k1, k2, k3, k4 = jax.random.split(k, 4)
            gamma = jax.random.uniform(k1, (c,), jnp.float32, 0.5, 1.5)
            beta = 0.1 * jax.random.normal(k2, (c,), jnp.float32)
            mean = 0.1 * jax.random.normal(k3, (c,), jnp.float32)
            var = jax.random.uniform(k4, (c,), jnp.float32, 0.5, 1.5)
            return gamma, beta, mean, var

        keys = jax.random.split(key, 6)
        self.raw = {}
        if expand_ratio != 1:
            self.raw["pw_w"] = 0.1 * jax.random.normal(
                keys[0], (self.hidden, inp, 1, 1), jnp.float32)
            self.raw["bn1"] = bn_params(keys[1], self.hidden)
        self.raw["dw_w"] = 0.1 * jax.random.normal(
            keys[2], (self.hidden, 1, 3, 3), jnp.float32)
        self.raw["bn2"] = bn_params(keys[3], self.hidden)
        self.raw["pwl_w"] = 0.1 * jax.random.normal(
            keys[4], (oup, self.hidden, 1, 1), jnp.float32)
        self.raw["bn3"] = bn_params(keys[5], oup)

        # Fold eval-mode BN into conv weights / per-channel biases (glue).
        self.params = {}
        if expand_ratio != 1:
            s1, b1 = _bn_fold(*self.raw["bn1"])
            self.params["w1"] = (self.raw["pw_w"][:, :, 0, 0] * s1[:, None]).T
            self.params["b1"] = b1[None, :]
        s2, b2 = _bn_fold(*self.raw["bn2"])
        self.params["dwk"] = (jnp.transpose(self.raw["dw_w"][:, 0], (1, 2, 0))
                              * s2[None, None, :])
        self.params["b2"] = b2[None, :]
        s3, b3 = _bn_fold(*self.raw["bn3"])
        self.params["w2"] = (self.raw["pwl_w"][:, :, 0, 0] * s3[:, None]).T
        self.params["b3"] = b3[None, :]

    def forward_nhwc(self, x):
        return inverted_residual_block(
            x, self.params, stride=self.stride,
            expand=(self.expand_ratio != 1),
            residual=self.use_res_connect, out_dtype=x.dtype)

    def __call__(self, x_nchw):
        # NCHW interface only to match the PyTorch module; chained blocks
        # should call forward_nhwc directly and stay NHWC end-to-end.
        x = jnp.transpose(x_nchw, (0, 2, 3, 1))                  # NCHW -> NHWC
        return jnp.transpose(self.forward_nhwc(x), (0, 3, 1, 2))  # NHWC -> NCHW


# ----------------------------- pure-JAX reference ----------------------------

def reference_forward(x_nchw, mod: InvertedResidualPallas):
    x = jnp.transpose(x_nchw, (0, 2, 3, 1))
    dn = ("NHWC", "HWIO", "NHWC")

    def bn(y, p):
        g, b, m, v = p
        return (y - m) / jnp.sqrt(v + _BN_EPS) * g + b

    h = x
    if mod.expand_ratio != 1:
        w = jnp.transpose(mod.raw["pw_w"][:, :, 0, 0], (1, 0))[None, None]
        h = lax.conv_general_dilated(h, w, (1, 1), "VALID", dimension_numbers=dn)
        h = jnp.clip(bn(h, mod.raw["bn1"]), 0.0, 6.0)
    kw = jnp.transpose(mod.raw["dw_w"], (2, 3, 1, 0))            # (3,3,1,hid)
    h = lax.conv_general_dilated(h, kw, (mod.stride, mod.stride),
                                 ((1, 1), (1, 1)), dimension_numbers=dn,
                                 feature_group_count=mod.hidden)
    h = jnp.clip(bn(h, mod.raw["bn2"]), 0.0, 6.0)
    w = jnp.transpose(mod.raw["pwl_w"][:, :, 0, 0], (1, 0))[None, None]
    h = lax.conv_general_dilated(h, w, (1, 1), "VALID", dimension_numbers=dn)
    h = bn(h, mod.raw["bn3"])
    if mod.use_res_connect:
        h = x + h
    return jnp.transpose(h, (0, 3, 1, 2))


# ------------------------------------ main -----------------------------------

if __name__ == "__main__":
    key = jax.random.PRNGKey(0)
    N, H, W = 2, 16, 16
    configs = [
        # (inp, oup, stride, expand_ratio)
        (8, 8, 1, 4),    # expand path + residual connection
        (8, 16, 2, 4),   # stride-2 path (rows+cols subsampled in-kernel)
        (8, 8, 1, 1),    # expand_ratio == 1 (no expand conv) + residual
    ]

    for cfg_i, (inp, oup, stride, er) in enumerate(configs):
        k_x, k_p = jax.random.split(jax.random.fold_in(key, cfg_i))
        x = jax.random.normal(k_x, (N, inp, H, W), jnp.float32)
        mod = InvertedResidualPallas(inp, oup, stride, er, k_p)

        out = jax.block_until_ready(mod(x))
        ref = jax.block_until_ready(reference_forward(x, mod))
        np.testing.assert_allclose(np.asarray(out), np.asarray(ref),
                                   rtol=1e-4, atol=1e-4)
        ho = (H - 1) // stride + 1
        wo = (W - 1) // stride + 1
        assert out.shape == (N, oup, ho, wo)

    print("KERNEL_OK")
</pallas_src>

<mosaic_0001>
module attributes {stable_mosaic.version = 11 : i64} {
  func.func @_fused_kernel(%arg0: i32, %arg1: i32, %arg2: memref<1x18x24x8xf32, #tpu.memory_space<vmem>>, %arg3: memref<8x32xf32, #tpu.memory_space<vmem>>, %arg4: memref<1x32xf32, #tpu.memory_space<vmem>>, %arg5: memref<3x3x32xf32, #tpu.memory_space<vmem>>, %arg6: memref<1x32xf32, #tpu.memory_space<vmem>>, %arg7: memref<32x8xf32, #tpu.memory_space<vmem>>, %arg8: memref<1x8xf32, #tpu.memory_space<vmem>>, %arg9: memref<1x16x16x8xf32, #tpu.memory_space<vmem>>, %arg10: memref<18x24x32xf32, #tpu.memory_space<vmem>>) attributes {dimension_semantics = [#tpu.dimension_semantics<parallel>, #tpu.dimension_semantics<arbitrary>], iteration_bounds = array<i64: 2, 1>, scalar_prefetch = 0 : i64, scratch_operands = 1 : i64, tpu.core_type = #tpu.core_type<tc>, window_params = [{transform_indices = @transform_0, window_bounds = array<i64: 1, 18, 24, 8>}, {pipeline_mode = #tpu.pipeline_mode<synchronous>, transform_indices = @transform_1, window_bounds = array<i64: 8, 32>}, {pipeline_mode = #tpu.pipeline_mode<synchronous>, transform_indices = @transform_2, window_bounds = array<i64: 1, 32>}, {pipeline_mode = #tpu.pipeline_mode<synchronous>, transform_indices = @transform_3, window_bounds = array<i64: 3, 3, 32>}, {pipeline_mode = #tpu.pipeline_mode<synchronous>, transform_indices = @transform_4, window_bounds = array<i64: 1, 32>}, {pipeline_mode = #tpu.pipeline_mode<synchronous>, transform_indices = @transform_5, window_bounds = array<i64: 32, 8>}, {pipeline_mode = #tpu.pipeline_mode<synchronous>, transform_indices = @transform_6, window_bounds = array<i64: 1, 8>}, {transform_indices = @transform_7, window_bounds = array<i64: 1, 16, 16, 8>}]} {
    %c16_i32 = arith.constant 16 : i32
    %0 = arith.muli %c16_i32, %arg1 : i32
    %c0 = arith.constant 0 : index
    %1 = arith.index_cast %0 : i32 to index
    %c0_0 = arith.constant 0 : index
    %c0_1 = arith.constant 0 : index
    %2 = vector.load %arg2[%c0, %1, %c0_0, %c0_1] : memref<1x18x24x8xf32, #tpu.memory_space<vmem>>, vector<1x18x24x8xf32>
    %3 = vector.shape_cast %2 : vector<1x18x24x8xf32> to vector<18x24x8xf32>
    %4 = vector.shape_cast %3 : vector<18x24x8xf32> to vector<432x8xf32>
    %c0_2 = arith.constant 0 : index
    %c0_3 = arith.constant 0 : index
    %5 = vector.load %arg3[%c0_2, %c0_3] : memref<8x32xf32, #tpu.memory_space<vmem>>, vector<8x32xf32>
    %cst = arith.constant dense<0.000000e+00> : vector<432x32xf32>
    %6 = tpu.matmul %4, %5, %cst {dimension_numbers = #tpu.dot_dimension_numbers<[1], [0], [0], [1], [0, 0, 1, 1], [], []>} : vector<432x8xf32>, vector<8x32xf32>, vector<432x32xf32> -> vector<432x32xf32>
    %c0_4 = arith.constant 0 : index
    %c0_5 = arith.constant 0 : index
    %7 = vector.load %arg4[%c0_4, %c0_5] : memref<1x32xf32, #tpu.memory_space<vmem>>, vector<1x32xf32>
    %8 = vector.broadcast %7 : vector<1x32xf32> to vector<432x32xf32>
    %9 = arith.addf %6, %8 : vector<432x32xf32>
    %cst_6 = arith.constant 0.000000e+00 : f32
    %cst_7 = arith.constant 6.000000e+00 : f32
    %10 = vector.broadcast %cst_6 : f32 to vector<432x32xf32>
    %11 = arith.maximumf %10, %9 : vector<432x32xf32>
    %12 = vector.broadcast %cst_7 : f32 to vector<432x32xf32>
    %13 = arith.minimumf %12, %11 : vector<432x32xf32>
    %14 = vector.shape_cast %13 : vector<432x32xf32> to vector<18x24x32xf32>
    %15 = tpu.iota {dimensions = array<i32: 0>} : vector<24x32xi32>
    %c1_i32 = arith.constant 1 : i32
    %16 = vector.broadcast %c1_i32 : i32 to vector<24x32xi32>
    %17 = arith.cmpi sge, %15, %16 : vector<24x32xi32>
    %c16_i32_8 = arith.constant 16 : i32
    %18 = vector.broadcast %c16_i32_8 : i32 to vector<24x32xi32>
    %19 = arith.cmpi sle, %15, %18 : vector<24x32xi32>
    %20 = arith.andi %17, %19 : vector<24x32xi1>
    %cst_9 = arith.constant 1.000000e+00 : f32
    %cst_10 = arith.constant 0.000000e+00 : f32
    %21 = vector.broadcast %cst_9 : f32 to vector<24x32xf32>
    %22 = vector.broadcast %cst_10 : f32 to vector<24x32xf32>
    %23 = arith.select %20, %21, %22 : vector<24x32xi1>, vector<24x32xf32>
    %24 = vector.shape_cast %23 : vector<24x32xf32> to vector<1x24x32xf32>
    %25 = vector.broadcast %24 : vector<1x24x32xf32> to vector<18x24x32xf32>
    %26 = arith.mulf %14, %25 : vector<18x24x32xf32>
    %c0_11 = arith.constant 0 : index
    %c0_12 = arith.constant 0 : index
    %c0_13 = arith.constant 0 : index
    %27 = vector.load %arg10[%c0_11, %c0_12, %c0_13] : memref<18x24x32xf32, #tpu.memory_space<vmem>>, vector<18x24x32xf32>
    tpu.vector_store %arg10[%c0_11, %c0_12, %c0_13], %26 {strides = array<i32>} : memref<18x24x32xf32, #tpu.memory_space<vmem>>, vector<18x24x32xf32>,
    %c0_i32 = arith.constant 0 : i32
    %28 = arith.cmpi eq, %0, %c0_i32 : i32
    %29 = arith.extui %28 : i1 to i32
    %c0_i32_14 = arith.constant 0 : i32
    %30 = arith.cmpi ne, %29, %c0_i32_14 : i32
    scf.if %30 {
      %cst_87 = arith.constant 0.000000e+00 : f32
      %122 = vector.broadcast %cst_87 : f32 to vector<24x32xf32>
      %c0_88 = arith.constant 0 : index
      %c0_89 = arith.constant 0 : index
      %c0_90 = arith.constant 0 : index
      %123 = vector.load %arg10[%c0_88, %c0_89, %c0_90] : memref<18x24x32xf32, #tpu.memory_space<vmem>>, vector<1x24x32xf32>
      %124 = vector.shape_cast %123 : vector<1x24x32xf32> to vector<24x32xf32>
      %125 = vector.shape_cast %122 : vector<24x32xf32> to vector<1x24x32xf32>
      tpu.vector_store %arg10[%c0_88, %c0_89, %c0_90], %125 {strides = array<i32>} : memref<18x24x32xf32, #tpu.memory_space<vmem>>, vector<1x24x32xf32>,
    } else {
    }
    %c18_i32 = arith.constant 18 : i32
    %31 = arith.addi %0, %c18_i32 : i32
    %c18_i32_15 = arith.constant 18 : i32
    %32 = arith.cmpi eq, %31, %c18_i32_15 : i32
    %33 = arith.extui %32 : i1 to i32
    %c0_i32_16 = arith.constant 0 : i32
    %34 = arith.cmpi ne, %33, %c0_i32_16 : i32
    scf.if %34 {
      %cst_87 = arith.constant 0.000000e+00 : f32
      %122 = vector.broadcast %cst_87 : f32 to vector<24x32xf32>
      %c17 = arith.constant 17 : index
      %c0_88 = arith.constant 0 : index
      %c0_89 = arith.constant 0 : index
      %123 = vector.load %arg10[%c17, %c0_88, %c0_89] : memref<18x24x32xf32, #tpu.memory_space<vmem>>, vector<1x24x32xf32>
      %124 = vector.shape_cast %123 : vector<1x24x32xf32> to vector<24x32xf32>
      %125 = vector.shape_cast %122 : vector<24x32xf32> to vector<1x24x32xf32>
      tpu.vector_store %arg10[%c17, %c0_88, %c0_89], %125 {strides = array<i32>} : memref<18x24x32xf32, #tpu.memory_space<vmem>>, vector<1x24x32xf32>,
    } else {
    }
    %cst_17 = arith.constant 0.000000e+00 : f32
    %35 = vector.broadcast %cst_17 : f32 to vector<16x16x32xf32>
    %c0_18 = arith.constant 0 : index
    %c0_19 = arith.constant 0 : index
    %c0_20 = arith.constant 0 : index
    %36 = vector.load %arg10[%c0_18, %c0_19, %c0_20] : memref<18x24x32xf32, #tpu.memory_space<vmem>>, vector<16x16x32xf32>
    %c0_21 = arith.constant 0 : index
    %c0_22 = arith.constant 0 : index
    %c0_23 = arith.constant 0 : index
    %37 = vector.load %arg5[%c0_21, %c0_22, %c0_23] : memref<3x3x32xf32, #tpu.memory_space<vmem>>, vector<1x1x32xf32>
    %38 = vector.shape_cast %37 : vector<1x1x32xf32> to vector<32xf32>
    %39 = vector.shape_cast %38 : vector<32xf32> to vector<1x1x32xf32>
    %40 = vector.broadcast %39 : vector<1x1x32xf32> to vector<16x16x32xf32>
    %41 = arith.mulf %36, %40 : vector<16x16x32xf32>
    %42 = arith.addf %35, %41 : vector<16x16x32xf32>
    %c0_24 = arith.constant 0 : index
    %c1 = arith.constant 1 : index
    %c0_25 = arith.constant 0 : index
    %43 = vector.load %arg10[%c0_24, %c1, %c0_25] : memref<18x24x32xf32, #tpu.memory_space<vmem>>, vector<16x16x32xf32>
    %c0_26 = arith.constant 0 : index
    %c1_27 = arith.constant 1 : index
    %c0_28 = arith.constant 0 : index
    %44 = vector.load %arg5[%c0_26, %c1_27, %c0_28] : memref<3x3x32xf32, #tpu.memory_space<vmem>>, vector<1x1x32xf32>
    %45 = vector.shape_cast %44 : vector<1x1x32xf32> to vector<32xf32>
    %46 = vector.shape_cast %45 : vector<32xf32> to vector<1x1x32xf32>
    %47 = vector.broadcast %46 : vector<1x1x32xf32> to vector<16x16x32xf32>
    %48 = arith.mulf %43, %47 : vector<16x16x32xf32>
    %49 = arith.addf %42, %48 : vector<16x16x32xf32>
    %c0_29 = arith.constant 0 : index
    %c2 = arith.constant 2 : index
    %c0_30 = arith.constant 0 : index
    %50 = vector.load %arg10[%c0_29, %c2, %c0_30] : memref<18x24x32xf32, #tpu.memory_space<vmem>>, vector<16x16x32xf32>
    %c0_31 = arith.constant 0 : index
    %c2_32 = arith.constant 2 : index
    %c0_33 = arith.constant 0 : index
    %51 = vector.load %arg5[%c0_31, %c2_32, %c0_33] : memref<3x3x32xf32, #tpu.memory_space<vmem>>, vector<1x1x32xf32>
    %52 = vector.shape_cast %51 : vector<1x1x32xf32> to vector<32xf32>
    %53 = vector.shape_cast %52 : vector<32xf32> to vector<1x1x32xf32>
    %54 = vector.broadcast %53 : vector<1x1x32xf32> to vector<16x16x32xf32>
    %55 = arith.mulf %50, %54 : vector<16x16x32xf32>
    %56 = arith.addf %49, %55 : vector<16x16x32xf32>
    %c1_34 = arith.constant 1 : index
    %c0_35 = arith.constant 0 : index
    %c0_36 = arith.constant 0 : index
    %57 = vector.load %arg10[%c1_34, %c0_35, %c0_36] : memref<18x24x32xf32, #tpu.memory_space<vmem>>, vector<16x16x32xf32>
    %c1_37 = arith.constant 1 : index
    %c0_38 = arith.constant 0 : index
    %c0_39 = arith.constant 0 : index
    %58 = vector.load %arg5[%c1_37, %c0_38, %c0_39] : memref<3x3x32xf32, #tpu.memory_space<vmem>>, vector<1x1x32xf32>
    %59 = vector.shape_cast %58 : vector<1x1x32xf32> to vector<32xf32>
    %60 = vector.shape_cast %59 : vector<32xf32> to vector<1x1x32xf32>
    %61 = vector.broadcast %60 : vector<1x1x32xf32> to vector<16x16x32xf32>
    %62 = arith.mulf %57, %61 : vector<16x16x32xf32>
    %63 = arith.addf %56, %62 : vector<16x16x32xf32>
    %c1_40 = arith.constant 1 : index
    %c1_41 = arith.constant 1 : index
    %c0_42 = arith.constant 0 : index
    %64 = vector.load %arg10[%c1_40, %c1_41, %c0_42] : memref<18x24x32xf32, #tpu.memory_space<vmem>>, vector<16x16x32xf32>
    %c1_43 = arith.constant 1 : index
    %c1_44 = arith.constant 1 : index
    %c0_45 = arith.constant 0 : index
    %65 = vector.load %arg5[%c1_43, %c1_44, %c0_45] : memref<3x3x32xf32, #tpu.memory_space<vmem>>, vector<1x1x32xf32>
    %66 = vector.shape_cast %65 : vector<1x1x32xf32> to vector<32xf32>
    %67 = vector.shape_cast %66 : vector<32xf32> to vector<1x1x32xf32>
    %68 = vector.broadcast %67 : vector<1x1x32xf32> to vector<16x16x32xf32>
    %69 = arith.mulf %64, %68 : vector<16x16x32xf32>
    %70 = arith.addf %63, %69 : vector<16x16x32xf32>
    %c1_46 = arith.constant 1 : index
    %c2_47 = arith.constant 2 : index
    %c0_48 = arith.constant 0 : index
    %71 = vector.load %arg10[%c1_46, %c2_47, %c0_48] : memref<18x24x32xf32, #tpu.memory_space<vmem>>, vector<16x16x32xf32>
    %c1_49 = arith.constant 1 : index
    %c2_50 = arith.constant 2 : index
    %c0_51 = arith.constant 0 : index
    %72 = vector.load %arg5[%c1_49, %c2_50, %c0_51] : memref<3x3x32xf32, #tpu.memory_space<vmem>>, vector<1x1x32xf32>
    %73 = vector.shape_cast %72 : vector<1x1x32xf32> to vector<32xf32>
    %74 = vector.shape_cast %73 : vector<32xf32> to vector<1x1x32xf32>
    %75 = vector.broadcast %74 : vector<1x1x32xf32> to vector<16x16x32xf32>
    %76 = arith.mulf %71, %75 : vector<16x16x32xf32>
    %77 = arith.addf %70, %76 : vector<16x16x32xf32>
    %c2_52 = arith.constant 2 : index
    %c0_53 = arith.constant 0 : index
    %c0_54 = arith.constant 0 : index
    %78 = vector.load %arg10[%c2_52, %c0_53, %c0_54] : memref<18x24x32xf32, #tpu.memory_space<vmem>>, vector<16x16x32xf32>
    %c2_55 = arith.constant 2 : index
    %c0_56 = arith.constant 0 : index
    %c0_57 = arith.constant 0 : index
    %79 = vector.load %arg5[%c2_55, %c0_56, %c0_57] : memref<3x3x32xf32, #tpu.memory_space<vmem>>, vector<1x1x32xf32>
    %80 = vector.shape_cast %79 : vector<1x1x32xf32> to vector<32xf32>
    %81 = vector.shape_cast %80 : vector<32xf32> to vector<1x1x32xf32>
    %82 = vector.broadcast %81 : vector<1x1x32xf32> to vector<16x16x32xf32>
    %83 = arith.mulf %78, %82 : vector<16x16x32xf32>
    %84 = arith.addf %77, %83 : vector<16x16x32xf32>
    %c2_58 = arith.constant 2 : index
    %c1_59 = arith.constant 1 : index
    %c0_60 = arith.constant 0 : index
    %85 = vector.load %arg10[%c2_58, %c1_59, %c0_60] : memref<18x24x32xf32, #tpu.memory_space<vmem>>, vector<16x16x32xf32>
    %c2_61 = arith.constant 2 : index
    %c1_62 = arith.constant 1 : index
    %c0_63 = arith.constant 0 : index
    %86 = vector.load %arg5[%c2_61, %c1_62, %c0_63] : memref<3x3x32xf32, #tpu.memory_space<vmem>>, vector<1x1x32xf32>
    %87 = vector.shape_cast %86 : vector<1x1x32xf32> to vector<32xf32>
    %88 = vector.shape_cast %87 : vector<32xf32> to vector<1x1x32xf32>
    %89 = vector.broadcast %88 : vector<1x1x32xf32> to vector<16x16x32xf32>
    %90 = arith.mulf %85, %89 : vector<16x16x32xf32>
    %91 = arith.addf %84, %90 : vector<16x16x32xf32>
    %c2_64 = arith.constant 2 : index
    %c2_65 = arith.constant 2 : index
    %c0_66 = arith.constant 0 : index
    %92 = vector.load %arg10[%c2_64, %c2_65, %c0_66] : memref<18x24x32xf32, #tpu.memory_space<vmem>>, vector<16x16x32xf32>
    %c2_67 = arith.constant 2 : index
    %c2_68 = arith.constant 2 : index
    %c0_69 = arith.constant 0 : index
    %93 = vector.load %arg5[%c2_67, %c2_68, %c0_69] : memref<3x3x32xf32, #tpu.memory_space<vmem>>, vector<1x1x32xf32>
    %94 = vector.shape_cast %93 : vector<1x1x32xf32> to vector<32xf32>
    %95 = vector.shape_cast %94 : vector<32xf32> to vector<1x1x32xf32>
    %96 = vector.broadcast %95 : vector<1x1x32xf32> to vector<16x16x32xf32>
    %97 = arith.mulf %92, %96 : vector<16x16x32xf32>
    %98 = arith.addf %91, %97 : vector<16x16x32xf32>
    %c0_70 = arith.constant 0 : index
    %c0_71 = arith.constant 0 : index
    %99 = vector.load %arg6[%c0_70, %c0_71] : memref<1x32xf32, #tpu.memory_space<vmem>>, vector<1x32xf32>
    %100 = vector.shape_cast %99 : vector<1x32xf32> to vector<1x1x32xf32>
    %101 = vector.broadcast %100 : vector<1x1x32xf32> to vector<16x16x32xf32>
    %102 = arith.addf %98, %101 : vector<16x16x32xf32>
    %cst_72 = arith.constant 0.000000e+00 : f32
    %cst_73 = arith.constant 6.000000e+00 : f32
    %103 = vector.broadcast %cst_72 : f32 to vector<16x16x32xf32>
    %104 = arith.maximumf %103, %102 : vector<16x16x32xf32>
    %105 = vector.broadcast %cst_73 : f32 to vector<16x16x32xf32>
    %106 = arith.minimumf %105, %104 : vector<16x16x32xf32>
    %107 = vector.shape_cast %106 : vector<16x16x32xf32> to vector<256x32xf32>
    %c0_74 = arith.constant 0 : index
    %c0_75 = arith.constant 0 : index
    %108 = vector.load %arg7[%c0_74, %c0_75] : memref<32x8xf32, #tpu.memory_space<vmem>>, vector<32x8xf32>
    %cst_76 = arith.constant dense<0.000000e+00> : vector<256x8xf32>
    %109 = tpu.matmul %107, %108, %cst_76 {dimension_numbers = #tpu.dot_dimension_numbers<[1], [0], [0], [1], [0, 0, 1, 1], [], []>} : vector<256x32xf32>, vector<32x8xf32>, vector<256x8xf32> -> vector<256x8xf32>
    %c0_77 = arith.constant 0 : index
    %c0_78 = arith.constant 0 : index
    %110 = vector.load %arg8[%c0_77, %c0_78] : memref<1x8xf32, #tpu.memory_space<vmem>>, vector<1x8xf32>
    %111 = vector.broadcast %110 : vector<1x8xf32> to vector<256x8xf32>
    %112 = arith.addf %109, %111 : vector<256x8xf32>
    %113 = vector.shape_cast %112 : vector<256x8xf32> to vector<16x16x8xf32>
    %c1_i32_79 = arith.constant 1 : i32
    %114 = arith.addi %0, %c1_i32_79 : i32
    %c0_80 = arith.constant 0 : index
    %115 = arith.index_cast %114 : i32 to index
    %c1_81 = arith.constant 1 : index
    %c0_82 = arith.constant 0 : index
    %116 = vector.load %arg2[%c0_80, %115, %c1_81, %c0_82] : memref<1x18x24x8xf32, #tpu.memory_space<vmem>>, vector<1x16x16x8xf32>
    %117 = vector.shape_cast %116 : vector<1x16x16x8xf32> to vector<16x16x8xf32>
    %118 = arith.addf %113, %117 : vector<16x16x8xf32>
    %c0_83 = arith.constant 0 : index
    %c0_84 = arith.constant 0 : index
    %c0_85 = arith.constant 0 : index
    %c0_86 = arith.constant 0 : index
    %119 = vector.load %arg9[%c0_83, %c0_84, %c0_85, %c0_86] : memref<1x16x16x8xf32, #tpu.memory_space<vmem>>, vector<1x16x16x8xf32>
    %120 = vector.shape_cast %119 : vector<1x16x16x8xf32> to vector<16x16x8xf32>
    %121 = vector.shape_cast %118 : vector<16x16x8xf32> to vector<1x16x16x8xf32>
    tpu.vector_store %arg9[%c0_83, %c0_84, %c0_85, %c0_86], %121 {strides = array<i32>} : memref<1x16x16x8xf32, #tpu.memory_space<vmem>>, vector<1x16x16x8xf32>,
    return
  }
  func.func @transform_0(%arg0: i32, %arg1: i32) -> (i32, i32, i32, i32) {
    %c0_i32 = arith.constant 0 : i32
    %c0_i32_0 = arith.constant 0 : i32
    %c0_i32_1 = arith.constant 0 : i32
    %c0_i32_2 = arith.constant 0 : i32
    return %arg0, %c0_i32, %c0_i32_0, %c0_i32_1 : i32, i32, i32, i32
  }
  func.func @transform_1(%arg0: i32, %arg1: i32) -> (i32, i32) {
    %c0_i32 = arith.constant 0 : i32
    %c0_i32_0 = arith.constant 0 : i32
    %c0_i32_1 = arith.constant 0 : i32
    return %c0_i32, %c0_i32_0 : i32, i32
  }
  func.func @transform_2(%arg0: i32, %arg1: i32) -> (i32, i32) {
    %c0_i32 = arith.constant 0 : i32
    %c0_i32_0 = arith.constant 0 : i32
    %c0_i32_1 = arith.constant 0 : i32
    return %c0_i32, %c0_i32_0 : i32, i32
  }
  func.func @transform_3(%arg0: i32, %arg1: i32) -> (i32, i32, i32) {
    %c0_i32 = arith.constant 0 : i32
    %c0_i32_0 = arith.constant 0 : i32
    %c0_i32_1 = arith.constant 0 : i32
    %c0_i32_2 = arith.constant 0 : i32
    return %c0_i32, %c0_i32_0, %c0_i32_1 : i32, i32, i32
  }
  func.func @transform_4(%arg0: i32, %arg1: i32) -> (i32, i32) {
    %c0_i32 = arith.constant 0 : i32
    %c0_i32_0 = arith.constant 0 : i32
    %c0_i32_1 = arith.constant 0 : i32
    return %c0_i32, %c0_i32_0 : i32, i32
  }
  func.func @transform_5(%arg0: i32, %arg1: i32) -> (i32, i32) {
    %c0_i32 = arith.constant 0 : i32
    %c0_i32_0 = arith.constant 0 : i32
    %c0_i32_1 = arith.constant 0 : i32
    return %c0_i32, %c0_i32_0 : i32, i32
  }
  func.func @transform_6(%arg0: i32, %arg1: i32) -> (i32, i32) {
    %c0_i32 = arith.constant 0 : i32
    %c0_i32_0 = arith.constant 0 : i32
    %c0_i32_1 = arith.constant 0 : i32
    return %c0_i32, %c0_i32_0 : i32, i32
  }
  func.func @transform_7(%arg0: i32, %arg1: i32) -> (i32, i32, i32, i32) {
    %c0_i32 = arith.constant 0 : i32
    %c0_i32_0 = arith.constant 0 : i32
    %c0_i32_1 = arith.constant 0 : i32
    return %arg0, %arg1, %c0_i32, %c0_i32_0 : i32, i32, i32, i32
  }
}

</mosaic_0001>

<llo_original>
// kernel: tpu_custom_call.1
$region0: #{tpu_custom_call.1}
  #allocation0 [shape = 'u32[]', space=smem, size = 0x4, offset = 0x4, fixed_abs, tag = 'smem constant byte address 0x4 - core index']
  #allocation1 [shape = 'u32[144,128]{1,0:T(1,128)}', space=vmem, size = 0x12000, scoped, tag = 'internal scratch']
  #allocation2 [shape = 'f32[18,24,32]{2,1,0:T(8,128)}', space=vmem, size = 0x36000, scoped, tag = 'scratch operand']
  %s0 = inlined_call_operand.vmem [shape: f32[2,18,24,8], index: 0, kind: input, shape index: {}]
  %s1 = inlined_call_operand.vmem [shape: f32[8,32], index: 1, kind: input, shape index: {}]
  %s2 = inlined_call_operand.vmem [shape: f32[1,32], index: 2, kind: input, shape index: {}]
  %s3 = inlined_call_operand.vmem [shape: f32[3,3,32], index: 3, kind: input, shape index: {}]
  %s4 = inlined_call_operand.vmem [shape: f32[1,32], index: 4, kind: input, shape index: {}]
  %s5 = inlined_call_operand.vmem [shape: f32[32,8], index: 5, kind: input, shape index: {}]
  %s6 = inlined_call_operand.vmem [shape: f32[1,8], index: 6, kind: input, shape index: {}]
  %s7 = inlined_call_operand.vmem [shape: f32[2,16,16,8], index: 7, kind: output, shape index: {}]
  %s8 = sld [smem:[#allocation0]]
  $region69: #{tpu_custom_call.1} parent=0
    _
  %s10 = ssub.s32 1, %s8
  %s11 = scalar_select 0, %s10, %s8
  loop: start=0, step=1, limit=4
  $region2: #{tpu_custom_call.1} parent=0 // loop_pre_header
    _
  $region3: #{tpu_custom_call.1} parent=0 // loop_header
    %s13 = sphi 0, %s17
    %p14 = scmp.ge.s32.totalorder %s13, 4
    %s20 = sphi 0, %s32
    %s21 = sphi 0, %s28
    %s22 = sphi 0, %s20
    %s23 = sphi 0, %s21
    %s24 = sphi 0, %s22
    %s25 = sphi 0, %s23
    %s35 = sphi 0, %s37
    %s38 = sphi 0, %s35
    %s39 = sphi 0, %s38
    %s55 = sphi 0, %s39
    %s59 = sphi 0, %s59
    %s61 = sphi 0, %s59
    %s62 = sphi 0, %s61
    %s76 = sphi 0, %s62
    %s80 = sphi 0, %s80
    %s82 = sphi 0, %s80
    %s83 = sphi 0, %s82
    %s97 = sphi 0, %s83
    %s101 = sphi 0, %s101
    %s103 = sphi 0, %s101
    %s104 = sphi 0, %s103
    %s118 = sphi 0, %s104
    %s122 = sphi 0, %s122
    %s124 = sphi 0, %s122
    %s125 = sphi 0, %s124
    %s139 = sphi 0, %s125
    %s143 = sphi 0, %s143
    %s145 = sphi 0, %s143
    %s146 = sphi 0, %s145
    %s160 = sphi 0, %s146
    %s164 = sphi 0, %s164
    %s166 = sphi 0, %s164
    %s167 = sphi 0, %s166
    %s181 = sphi 0, %s167
    %s189 = sphi 0, %s191
    %s192 = sphi 0, %s189
    %s193 = sphi 0, %s192
    %s209 = sphi 0, %s193
  $region4: #{tpu_custom_call.1} parent=0 // loop_header_branch
    %16 = sbr.rel (%p14) target = $region8
  $region5: #{tpu_custom_call.1} parent=0 // loop_body
    %s18 = ssub.s32 %s13, 1
    %s19 = ssub.s32 %s13, 2
    %s26 = sadd.s32 1, %s21
    %p27 = scmp.ge.s32.totalorder %s26, 1
    %s28 = scalar_select %p27, 0, %s26
    %s29 = sadd.s32 1, %s20
    %s30 = scalar_select %p27, %s29, %s20
    %p31 = scmp.ge.s32.totalorder %s30, 2
    %s32 = scalar_select %p31, 0, %s30
    %s33 = ssub.s32 %s20, %s32
    %p34 = scmp.eq.s32.totalorder %s33, 0
    %s36 = sadd.s32 %s35, 1
    %s37 = scalar_select %p34, %s35, %s36
    %p40 = pneg %p34
    %p41 = scmp.eq.s32.totalorder %s13, 1
    %p42 = por %p40, %p41
    %p43 = scmp.ne.s32.totalorder %s35, %s38
    %p44 = scmp.eq.s32.totalorder %s13, 0
    %p45 = por %p43, %p44
    %p46 = scmp.ne.s32.totalorder %s35, %s38
    %p47 = scmp.eq.s32.totalorder %s18, 1
    %p48 = por %p46, %p47
    %p49 = scmp.ne.s32.totalorder %s38, %s39
    %p50 = scmp.eq.s32.totalorder %s18, 0
    %p51 = por %p49, %p50
    %p52 = scmp.ne.s32.totalorder %s38, %s39
    %p53 = scmp.eq.s32.totalorder %s19, 1
    %p54 = por %p52, %p53
    %p56 = scmp.ne.s32.totalorder %s39, %s55
    %p57 = scmp.eq.s32.totalorder %s19, 0
    %p58 = por %p56, %p57
    %s60 = sadd.s32 %s59, 1
    %p63 = scmp.eq.s32.totalorder %s13, 1
    %p64 = scmp.ne.s32.totalorder %s59, %s61
    %p65 = scmp.eq.s32.totalorder %s13, 0
    %p66 = por %p64, %p65
    %p67 = scmp.ne.s32.totalorder %s59, %s61
    %p68 = scmp.eq.s32.totalorder %s18, 1
    %p69 = por %p67, %p68
    %p70 = scmp.ne.s32.totalorder %s61, %s62
    %p71 = scmp.eq.s32.totalorder %s18, 0
    %p72 = por %p70, %p71
    %p73 = scmp.ne.s32.totalorder %s61, %s62
    %p74 = scmp.eq.s32.totalorder %s19, 1
    %p75 = por %p73, %p74
    %p77 = scmp.ne.s32.totalorder %s62, %s76
    %p78 = scmp.eq.s32.totalorder %s19, 0
    %p79 = por %p77, %p78
    %s81 = sadd.s32 %s80, 1
    %p84 = scmp.eq.s32.totalorder %s13, 1
    %p85 = scmp.ne.s32.totalorder %s80, %s82
    %p86 = scmp.eq.s32.totalorder %s13, 0
    %p87 = por %p85, %p86
    %p88 = scmp.ne.s32.totalorder %s80, %s82
    %p89 = scmp.eq.s32.totalorder %s18, 1
    %p90 = por %p88, %p89
    %p91 = scmp.ne.s32.totalorder %s82, %s83
    %p92 = scmp.eq.s32.totalorder %s18, 0
    %p93 = por %p91, %p92
    %p94 = scmp.ne.s32.totalorder %s82, %s83
    %p95 = scmp.eq.s32.totalorder %s19, 1
    %p96 = por %p94, %p95
    %p98 = scmp.ne.s32.totalorder %s83, %s97
    %p99 = scmp.eq.s32.totalorder %s19, 0
    %p100 = por %p98, %p99
    %s102 = sadd.s32 %s101, 1
    %p105 = scmp.eq.s32.totalorder %s13, 1
    %p106 = scmp.ne.s32.totalorder %s101, %s103
    %p107 = scmp.eq.s32.totalorder %s13, 0
    %p108 = por %p106, %p107
    %p109 = scmp.ne.s32.totalorder %s101, %s103
    %p110 = scmp.eq.s32.totalorder %s18, 1
    %p111 = por %p109, %p110
    %p112 = scmp.ne.s32.totalorder %s103, %s104
    %p113 = scmp.eq.s32.totalorder %s18, 0
    %p114 = por %p112, %p113
    %p115 = scmp.ne.s32.totalorder %s103, %s104
    %p116 = scmp.eq.s32.totalorder %s19, 1
    %p117 = por %p115, %p116
    %p119 = scmp.ne.s32.totalorder %s104, %s118
    %p120 = scmp.eq.s32.totalorder %s19, 0
    %p121 = por %p119, %p120
    %s123 = sadd.s32 %s122, 1
    %p126 = scmp.eq.s32.totalorder %s13, 1
    %p127 = scmp.ne.s32.totalorder %s122, %s124
    %p128 = scmp.eq.s32.totalorder %s13, 0
    %p129 = por %p127, %p128
    %p130 = scmp.ne.s32.totalorder %s122, %s124
    %p131 = scmp.eq.s32.totalorder %s18, 1
    %p132 = por %p130, %p131
    %p133 = scmp.ne.s32.totalorder %s124, %s125
    %p134 = scmp.eq.s32.totalorder %s18, 0
    %p135 = por %p133, %p134
    %p136 = scmp.ne.s32.totalorder %s124, %s125
    %p137 = scmp.eq.s32.totalorder %s19, 1
    %p138 = por %p136, %p137
    %p140 = scmp.ne.s32.totalorder %s125, %s139
    %p141 = scmp.eq.s32.totalorder %s19, 0
    %p142 = por %p140, %p141
    %s144 = sadd.s32 %s143, 1
    %p147 = scmp.eq.s32.totalorder %s13, 1
    %p148 = scmp.ne.s32.totalorder %s143, %s145
    %p149 = scmp.eq.s32.totalorder %s13, 0
    %p150 = por %p148, %p149
    %p151 = scmp.ne.s32.totalorder %s143, %s145
    %p152 = scmp.eq.s32.totalorder %s18, 1
    %p153 = por %p151, %p152
    %p154 = scmp.ne.s32.totalorder %s145, %s146
    %p155 = scmp.eq.s32.totalorder %s18, 0
    %p156 = por %p154, %p155
    %p157 = scmp.ne.s32.totalorder %s145, %s146
    %p158 = scmp.eq.s32.totalorder %s19, 1
    %p159 = por %p157, %p158
    %p161 = scmp.ne.s32.totalorder %s146, %s160
    %p162 = scmp.eq.s32.totalorder %s19, 0
    %p163 = por %p161, %p162
    %s165 = sadd.s32 %s164, 1
    %p168 = scmp.eq.s32.totalorder %s13, 1
    %p169 = scmp.ne.s32.totalorder %s164, %s166
    %p170 = scmp.eq.s32.totalorder %s13, 0
    %p171 = por %p169, %p170
    %p172 = scmp.ne.s32.totalorder %s164, %s166
    %p173 = scmp.eq.s32.totalorder %s18, 1
    %p174 = por %p172, %p173
    %p175 = scmp.ne.s32.totalorder %s166, %s167
    %p176 = scmp.eq.s32.totalorder %s18, 0
    %p177 = por %p175, %p176
    %p178 = scmp.ne.s32.totalorder %s166, %s167
    %p179 = scmp.eq.s32.totalorder %s19, 1
    %p180 = por %p178, %p179
    %p182 = scmp.ne.s32.totalorder %s167, %s181
    %p183 = scmp.eq.s32.totalorder %s19, 0
    %p184 = por %p182, %p183
    %s185 = ssub.s32 %s20, %s32
    %s186 = ssub.s32 %s21, %s28
    %s187 = sor.u32 %s185, %s186
    %p188 = scmp.eq.s32.totalorder %s187, 0
    %s190 = sadd.s32 %s189, 1
    %s191 = scalar_select %p188, %s189, %s190
    %p194 = pneg %p188
    %p195 = scmp.eq.s32.totalorder %s13, 1
    %p196 = por %p194, %p195
    %p197 = scmp.ne.s32.totalorder %s189, %s192
    %p198 = scmp.eq.s32.totalorder %s13, 0
    %p199 = por %p197, %p198
    %p200 = scmp.ne.s32.totalorder %s189, %s192
    %p201 = scmp.eq.s32.totalorder %s18, 1
    %p202 = por %p200, %p201
    %p203 = scmp.ne.s32.totalorder %s192, %s193
    %p204 = scmp.eq.s32.totalorder %s18, 0
    %p205 = por %p203, %p204
    %p206 = scmp.ne.s32.totalorder %s192, %s193
    %p207 = scmp.eq.s32.totalorder %s19, 1
    %p208 = por %p206, %p207
    %p210 = scmp.ne.s32.totalorder %s193, %s209
    %p211 = scmp.eq.s32.totalorder %s19, 0
    %p212 = por %p210, %p211
    %p213 = scmp.le.s32.totalorder 1, %s13
    %p214 = scmp.lt.s32.totalorder %s13, 3
    %p215 = pnand %p213, %p214
    %p216 = pneg %p215
    // Predicated region
    $region9: #{tpu_custom_call.1} parent=5 // pred_check
      _
    $region10: #{tpu_custom_call.1} parent=5 // pred_check_branch
      %218 = sbr.rel (%p215) target = $region12
    $region11: #{tpu_custom_call.1} parent=5 // pred_region
      %s219 = ssub.s32 %s13, 1
      // Predicated region
      $region13: #{tpu_custom_call.1} parent=11 // pred_check
        %p220 = pneg %p72
      $region14: #{tpu_custom_call.1} parent=11 // pred_check_branch
        %222 = sbr.rel (%p220) target = $region16
      $region15: #{tpu_custom_call.1} parent=11 // pred_region
        _
      $region16: #{tpu_custom_call.1} parent=11 // pred_fallthru
        _
      // Predicated region
      $region17: #{tpu_custom_call.1} parent=11 // pred_check
        %p223 = pneg %p93
      $region18: #{tpu_custom_call.1} parent=11 // pred_check_branch
        %225 = sbr.rel (%p223) target = $region20
      $region19: #{tpu_custom_call.1} parent=11 // pred_region
        _
      $region20: #{tpu_custom_call.1} parent=11 // pred_fallthru
        _
      // Predicated region
      $region21: #{tpu_custom_call.1} parent=11 // pred_check
        %p226 = pneg %p114
      $region22: #{tpu_custom_call.1} parent=11 // pred_check_branch
        %228 = sbr.rel (%p226) target = $region24
      $region23: #{tpu_custom_call.1} parent=11 // pred_region
        _
      $region24: #{tpu_custom_call.1} parent=11 // pred_fallthru
        _
      // Predicated region
      $region25: #{tpu_custom_call.1} parent=11 // pred_check
        %p229 = pneg %p135
      $region26: #{tpu_custom_call.1} parent=11 // pred_check_branch
        %231 = sbr.rel (%p229) target = $region28
      $region27: #{tpu_custom_call.1} parent=11 // pred_region
        _
      $region28: #{tpu_custom_call.1} parent=11 // pred_fallthru
        _
      // Predicated region
      $region29: #{tpu_custom_call.1} parent=11 // pred_check
        %p232 = pneg %p156
      $region30: #{tpu_custom_call.1} parent=11 // pred_check_branch
        %234 = sbr.rel (%p232) target = $region32
      $region31: #{tpu_custom_call.1} parent=11 // pred_region
        _
      $region32: #{tpu_custom_call.1} parent=11 // pred_fallthru
        _
      // Predicated region
      $region33: #{tpu_custom_call.1} parent=11 // pred_check
        %p235 = pneg %p177
      $region34: #{tpu_custom_call.1} parent=11 // pred_check_branch
        %237 = sbr.rel (%p235) target = $region36
      $region35: #{tpu_custom_call.1} parent=11 // pred_region
        _
      $region36: #{tpu_custom_call.1} parent=11 // pred_fallthru
        _
    $region12: #{tpu_custom_call.1} parent=5 // pred_fallthru
      _
    %p238 = scmp.lt.s32.totalorder %s13, 2
    // Predicated region
    $region37: #{tpu_custom_call.1} parent=5 // pred_check
      %p239 = pneg %p238
    $region38: #{tpu_custom_call.1} parent=5 // pred_check_branch
      %241 = sbr.rel (%p239) target = $region40
    $region39: #{tpu_custom_call.1} parent=5 // pred_region
      // Predicated region
      $region41: #{tpu_custom_call.1} parent=39 // pred_check
        %p242 = pneg %p45
      $region42: #{tpu_custom_call.1} parent=39 // pred_check_branch
        %244 = sbr.rel (%p242) target = $region44
      $region43: #{tpu_custom_call.1} parent=39 // pred_region
        %p245 = scmp.lt.s32.totalorder %s20, 1
        %s246 = scalar_select %p245, %s20, 1
        %s247 = smul.addr %s246, 54
        %s248 = smul.addr %s247, 8
        %s249 = scalar_lea.vmem %s0, %s248
      $region44: #{tpu_custom_call.1} parent=39 // pred_fallthru
        _
    $region40: #{tpu_custom_call.1} parent=5 // pred_fallthru
      _
    %p250 = scmp.le.s32.totalorder 1, %s13
    %p251 = scmp.lt.s32.totalorder %s13, 3
    %p252 = pnand %p250, %p251
    %p253 = pneg %p252
    // Predicated region
    $region45: #{tpu_custom_call.1} parent=5 // pred_check
      _
    $region46: #{tpu_custom_call.1} parent=5 // pred_check_branch
      %255 = sbr.rel (%p252) target = $region48
    $region47: #{tpu_custom_call.1} parent=5 // pred_region
      %s256 = ssub.s32 %s13, 1
      %p257 = scmp.lt.s32.totalorder %s22, 1
      %s258 = scalar_select %p257, %s22, 1
      %s259 = smul.addr %s258, 54
      %s260 = smul.addr %s259, 8
      %s261 = scalar_lea.vmem %s0, %s260
      %p262 = pneg %p51
      %p263 = pneg %p48
      %p264 = pneg %p72
      %p265 = pneg %p69
      %p266 = pneg %p93
      %p267 = pneg %p90
      %p268 = pneg %p114
      %p269 = pneg %p111
      %p270 = pneg %p135
      %p271 = pneg %p132
      %p272 = pneg %p156
      %p273 = pneg %p153
      %p274 = pneg %p177
      %p275 = pneg %p174
      %p276 = pneg %p205
      %p277 = pneg %p202
      %s278 = smul.u32 16, %s23
      %p279 = scmp.lt.s32.totalorder %s22, 1
      %s280 = scalar_select %p279, %s22, 1
      %p281 = scmp.lt.s32.totalorder %s278, 15
      %s282 = scalar_select %p281, %s278, 15
      %s283 = smul.addr %s282, 2
      %s284 = smul.addr %s280, 32
      %s285 = sadd.s32 %s283, %s284
      %s286 = smul.addr %s285, 8
      %s287 = scalar_lea.vmem %s7, %s286
      %p288 = scmp.lt.s32.totalorder %s22, 1
      %s289 = scalar_select %p288, %s22, 1
      %s290 = smul.addr %s289, 54
      %s291 = smul.addr %s290, 8
      %s292 = scalar_lea.vmem %s0, %s291
      %s293 = smul.u32 16, %s23
      %p294 = scmp.lt.s32.totalorder %s22, 1
      %s295 = scalar_select %p294, %s22, 1
      %p296 = scmp.lt.s32.totalorder %s293, 15
      %s297 = scalar_select %p296, %s293, 15
      %s298 = smul.addr %s297, 2
      %s299 = smul.addr %s295, 32
      %s300 = sadd.s32 %s298, %s299
      %s301 = smul.addr %s300, 8
      %s302 = scalar_lea.vmem %s7, %s301
      %s303 = smul.u32 16, %s23
      %s304 = smul.u32 %s23, 16
      %s305 = smul.u32 %s304, 24
      %s306 = scalar_lea.vmem %s292, %s305
      %v307 = vld [vmem:[%s306] sm:$0xff]
      %v308 = vld [vmem:[%s306 + $0x8] sm:$0xff]
      %v309 = vld [vmem:[%s306 + $0x10] sm:$0xff]
      %v310 = vld [vmem:[%s306 + $0x18] sm:$0xff]
      %v311 = vld [vmem:[%s306 + $0x20] sm:$0xff]
      %v312 = vld [vmem:[%s306 + $0x28] sm:$0xff]
      %v313 = vld [vmem:[%s306 + $0x30] sm:$0xff]
      %v314 = vld [vmem:[%s306 + $0x38] sm:$0xff]
      %v315 = vld [vmem:[%s306 + $0x40] sm:$0xff]
      %v316 = vld [vmem:[%s306 + $0x48] sm:$0xff]
      %v317 = vld [vmem:[%s306 + $0x50] sm:$0xff]
      %v318 = vld [vmem:[%s306 + $0x58] sm:$0xff]
      %v319 = vld [vmem:[%s306 + $0x60] sm:$0xff]
      %v320 = vld [vmem:[%s306 + $0x68] sm:$0xff]
      %v321 = vld [vmem:[%s306 + $0x70] sm:$0xff]
      %v322 = vld [vmem:[%s306 + $0x78] sm:$0xff]
      %v323 = vld [vmem:[%s306 + $0x80] sm:$0xff]
      %v324 = vld [vmem:[%s306 + $0x88] sm:$0xff]
      %v325 = vld [vmem:[%s306 + $0x90] sm:$0xff]
      %v326 = vld [vmem:[%s306 + $0x98] sm:$0xff]
      %v327 = vld [vmem:[%s306 + $0xa0] sm:$0xff]
      %v328 = vld [vmem:[%s306 + $0xa8] sm:$0xff]
      %v329 = vld [vmem:[%s306 + $0xb0] sm:$0xff]
      %v330 = vld [vmem:[%s306 + $0xb8] sm:$0xff]
      %v331 = vld [vmem:[%s306 + $0xc0] sm:$0xff]
      %v332 = vld [vmem:[%s306 + $0xc8] sm:$0xff]
      %v333 = vld [vmem:[%s306 + $0xd0] sm:$0xff]
      %v334 = vld [vmem:[%s306 + $0xd8] sm:$0xff]
      %v335 = vld [vmem:[%s306 + $0xe0] sm:$0xff]
      %v336 = vld [vmem:[%s306 + $0xe8] sm:$0xff]
      %v337 = vld [vmem:[%s306 + $0xf0] sm:$0xff]
      %v338 = vld [vmem:[%s306 + $0xf8] sm:$0xff]
      %v339 = vld [vmem:[%s306 + $0x100] sm:$0xff]
      %v340 = vld [vmem:[%s306 + $0x108] sm:$0xff]
      %v341 = vld [vmem:[%s306 + $0x110] sm:$0xff]
      %v342 = vld [vmem:[%s306 + $0x118] sm:$0xff]
      %v343 = vld [vmem:[%s306 + $0x120] sm:$0xff]
      %v344 = vld [vmem:[%s306 + $0x128] sm:$0xff]
      %v345 = vld [vmem:[%s306 + $0x130] sm:$0xff]
      %v346 = vld [vmem:[%s306 + $0x138] sm:$0xff]
      %v347 = vld [vmem:[%s306 + $0x140] sm:$0xff]
      %v348 = vld [vmem:[%s306 + $0x148] sm:$0xff]
      %v349 = vld [vmem:[%s306 + $0x150] sm:$0xff]
      %v350 = vld [vmem:[%s306 + $0x158] sm:$0xff]
      %v351 = vld [vmem:[%s306 + $0x160] sm:$0xff]
      %v352 = vld [vmem:[%s306 + $0x168] sm:$0xff]
      %v353 = vld [vmem:[%s306 + $0x170] sm:$0xff]
      %v354 = vld [vmem:[%s306 + $0x178] sm:$0xff]
      %v355 = vld [vmem:[%s306 + $0x180] sm:$0xff]
      %v356 = vld [vmem:[%s306 + $0x188] sm:$0xff]
      %v357 = vld [vmem:[%s306 + $0x190] sm:$0xff]
      %v358 = vld [vmem:[%s306 + $0x198] sm:$0xff]
      %v359 = vld [vmem:[%s306 + $0x1a0] sm:$0xff]
      %v360 = vld [vmem:[%s306 + $0x1a8] sm:$0xff]
      %v361 = vld [vmem:[%s1] sm:$0xff]
      %v362 = vld [vmem:[%s2] sm:$0x1]
      %v364 = vlaneseq
      %v365 = vshrl.u32 %v364, 7
      %v366 = vsub.s32 0, %v365
      %v367 = vrot.slane %v362, %v366
      %vm369 = vcmask 64512
      %v371 = vsel %vm369, %v307, 0
      %v374 = vsel %vm369, %v308, 0
      %v377 = vsel %vm369, %v309, 0
      %v380 = vsel %vm369, %v310, 0
      %v383 = vsel %vm369, %v311, 0
      %v386 = vsel %vm369, %v312, 0
      %v389 = vsel %vm369, %v313, 0
      %v392 = vsel %vm369, %v314, 0
      %v395 = vsel %vm369, %v315, 0
      %v398 = vsel %vm369, %v316, 0
      %v401 = vsel %vm369, %v317, 0
      %v404 = vsel %vm369, %v318, 0
      %v407 = vsel %vm369, %v319, 0
      %v410 = vsel %vm369, %v320, 0
      %v413 = vsel %vm369, %v321, 0
      %v416 = vsel %vm369, %v322, 0
      %v419 = vsel %vm369, %v323, 0
      %v422 = vsel %vm369, %v324, 0
      %v425 = vsel %vm369, %v325, 0
      %v428 = vsel %vm369, %v326, 0
      %v431 = vsel %vm369, %v327, 0
      %v434 = vsel %vm369, %v328, 0
      %v437 = vsel %vm369, %v329, 0
      %v440 = vsel %vm369, %v330, 0
      %v443 = vsel %vm369, %v331, 0
      %v446 = vsel %vm369, %v332, 0
      %v449 = vsel %vm369, %v333, 0
      %v452 = vsel %vm369, %v334, 0
      %v455 = vsel %vm369, %v335, 0
      %v458 = vsel %vm369, %v336, 0
      %v461 = vsel %vm369, %v337, 0
      %v464 = vsel %vm369, %v338, 0
      %v467 = vsel %vm369, %v339, 0
      %v470 = vsel %vm369, %v340, 0
      %v473 = vsel %vm369, %v341, 0
      %v476 = vsel %vm369, %v342, 0
      %v479 = vsel %vm369, %v343, 0
      %v482 = vsel %vm369, %v344, 0
      %v485 = vsel %vm369, %v345, 0
      %v488 = vsel %vm369, %v346, 0
      %v491 = vsel %vm369, %v347, 0
      %v494 = vsel %vm369, %v348, 0
      %v497 = vsel %vm369, %v349, 0
      %v500 = vsel %vm369, %v350, 0
      %v503 = vsel %vm369, %v351, 0
      %v506 = vsel %vm369, %v352, 0
      %v509 = vsel %vm369, %v353, 0
      %v512 = vsel %vm369, %v354, 0
      %v515 = vsel %vm369, %v355, 0
      %v518 = vsel %vm369, %v356, 0
      %v521 = vsel %vm369, %v357, 0
      %v524 = vsel %vm369, %v358, 0
      %v527 = vsel %vm369, %v359, 0
      %v530 = vsel %vm369, %v360, 0
      %532 = vmatprep.subr.mxu0 0.0
      %533 = vmatpush1.msra.mxu0 %v361
      %534 = vmatprep.subr.mxu0 0.0
      %535 = vmatpush1.msra.mxu0 0.0
      %536 = vmatprep.subr.mxu0 0.0
      %537 = vmatpush1.msra.mxu0 0.0
      %538 = vmatprep.subr.mxu0 0.0
      %539 = vmatpush1.msra.mxu0 0.0
      %540 = vmatprep.subr.mxu0 0.0
      %541 = vmatpush1.msra.mxu0 0.0
      %542 = vmatprep.subr.mxu0 0.0
      %543 = vmatpush1.msra.mxu0 0.0
      %544 = vmatprep.subr.mxu0 0.0
      %545 = vmatpush1.msra.mxu0 0.0
      %546 = vmatprep.subr.mxu0 0.0
      %547 = vmatpush1.msra.mxu0 0.0
      %548 = vmatprep.subr.mxu0 0.0
      %549 = vmatpush1.msra.mxu0 0.0
      %550 = vmatprep.subr.mxu0 0.0
      %551 = vmatpush1.msra.mxu0 0.0
      %552 = vmatprep.subr.mxu0 0.0
      %553 = vmatpush1.msra.mxu0 0.0
      %554 = vmatprep.subr.mxu0 0.0
      %555 = vmatpush1.msra.mxu0 0.0
      %556 = vmatprep.subr.mxu0 0.0
      %557 = vmatpush1.msra.mxu0 0.0
      %558 = vmatprep.subr.mxu0 0.0
      %559 = vmatpush1.msra.mxu0 0.0
      %560 = vmatprep.subr.mxu0 0.0
      %561 = vmatpush1.msra.mxu0 0.0
      %562 = vmatprep.subr.mxu0 0.0
      %563 = vmatpush1.msra.mxu0 0.0
      %564 = vmatprep.subr.mxu0 0.0
      %565 = vmatpush1.msra.mxu0 0.0
      %566 = vmatprep.subr.mxu0 0.0
      %567 = vmatpush1.msra.mxu0 0.0
      %568 = vmatprep.subr.mxu0 0.0
      %569 = vmatpush1.msra.mxu0 0.0
      %570 = vmatprep.subr.mxu0 0.0
      %571 = vmatpush1.msra.mxu0 0.0
      %572 = vmatprep.subr.mxu0 0.0
      %573 = vmatpush1.msra.mxu0 0.0
      %574 = vmatprep.subr.mxu0 0.0
      %575 = vmatpush1.msra.mxu0 0.0
      %576 = vmatprep.subr.mxu0 0.0
      %577 = vmatpush1.msra.mxu0 0.0
      %578 = vmatprep.subr.mxu0 0.0
      %579 = vmatpush1.msra.mxu0 0.0
      %580 = vmatprep.subr.mxu0 0.0
      %581 = vmatpush1.msra.mxu0 0.0
      %582 = vmatprep.subr.mxu0 0.0
      %583 = vmatpush1.msra.mxu0 0.0
      %584 = vmatprep.subr.mxu0 0.0
      %585 = vmatpush1.msra.mxu0 0.0
      %586 = vmatprep.subr.mxu0 0.0
      %587 = vmatpush1.msra.mxu0 0.0
      %588 = vmatprep.subr.mxu0 0.0
      %589 = vmatpush1.msra.mxu0 0.0
      %590 = vmatprep.subr.mxu0 0.0
      %591 = vmatpush1.msra.mxu0 0.0
      %592 = vmatprep.subr.mxu0 0.0
      %593 = vmatpush1.msra.mxu0 0.0
      %594 = vmatprep.subr.mxu0 0.0
      %595 = vmatpush1.msra.mxu0 0.0
      %596 = vmatprep.mubr.f32.mxu0 0.0
      %597 = vmatmul.mubr.f32.gmra.mrb[0].mxu0 %v371
      %v598 = vpop.f32.mrb[0].mxu0
      %v599 = vadd.f32 %v367, %v598
      %v600 = vpop.f32.mrb[0].mxu0
      %601 = vmatprep.mubr.f32.mxu0 0.0
      %602 = vmatmul.mubr.f32.gmra.mrb[0].mxu0 %v374
      %v603 = vpop.f32.mrb[0].mxu0
      %v604 = vadd.f32 %v367, %v603
      %v605 = vpop.f32.mrb[0].mxu0
      %606 = vmatprep.mubr.f32.mxu0 0.0
      %607 = vmatmul.mubr.f32.gmra.mrb[0].mxu0 %v377
      %v608 = vpop.f32.mrb[0].mxu0
      %v609 = vadd.f32 %v367, %v608
      %v610 = vpop.f32.mrb[0].mxu0
      %611 = vmatprep.mubr.f32.mxu0 0.0
      %612 = vmatmul.mubr.f32.gmra.mrb[0].mxu0 %v380
      %v613 = vpop.f32.mrb[0].mxu0
      %v614 = vadd.f32 %v367, %v613
      %v615 = vpop.f32.mrb[0].mxu0
      %616 = vmatprep.mubr.f32.mxu0 0.0
      %617 = vmatmul.mubr.f32.gmra.mrb[0].mxu0 %v383
      %v618 = vpop.f32.mrb[0].mxu0
      %v619 = vadd.f32 %v367, %v618
      %v620 = vpop.f32.mrb[0].mxu0
      %621 = vmatprep.mubr.f32.mxu0 0.0
      %622 = vmatmul.mubr.f32.gmra.mrb[0].mxu0 %v386
      %v623 = vpop.f32.mrb[0].mxu0
      %v624 = vadd.f32 %v367, %v623
      %v625 = vpop.f32.mrb[0].mxu0
      %626 = vmatprep.mubr.f32.mxu0 0.0
      %627 = vmatmul.mubr.f32.gmra.mrb[0].mxu0 %v389
      %v628 = vpop.f32.mrb[0].mxu0
      %v629 = vadd.f32 %v367, %v628
      %v630 = vpop.f32.mrb[0].mxu0
      %631 = vmatprep.mubr.f32.mxu0 0.0
      %632 = vmatmul.mubr.f32.gmra.mrb[0].mxu0 %v392
      %v633 = vpop.f32.mrb[0].mxu0
      %v634 = vadd.f32 %v367, %v633
      %v635 = vpop.f32.mrb[0].mxu0
      %636 = vmatprep.mubr.f32.mxu0 0.0
      %637 = vmatmul.mubr.f32.gmra.mrb[0].mxu0 %v395
      %v638 = vpop.f32.mrb[0].mxu0
      %v639 = vadd.f32 %v367, %v638
      %v640 = vpop.f32.mrb[0].mxu0
      %641 = vmatprep.mubr.f32.mxu0 0.0
      %642 = vmatmul.mubr.f32.gmra.mrb[0].mxu0 %v398
      %v643 = vpop.f32.mrb[0].mxu0
      %v644 = vadd.f32 %v367, %v643
      %v645 = vpop.f32.mrb[0].mxu0
      %646 = vmatprep.mubr.f32.mxu0 0.0
      %647 = vmatmul.mubr.f32.gmra.mrb[0].mxu0 %v401
      %v648 = vpop.f32.mrb[0].mxu0
      %v649 = vadd.f32 %v367, %v648
      %v650 = vpop.f32.mrb[0].mxu0
      %651 = vmatprep.mubr.f32.mxu0 0.0
      %652 = vmatmul.mubr.f32.gmra.mrb[0].mxu0 %v404
      %v653 = vpop.f32.mrb[0].mxu0
      %v654 = vadd.f32 %v367, %v653
      %v655 = vpop.f32.mrb[0].mxu0
      %656 = vmatprep.mubr.f32.mxu0 0.0
      %657 = vmatmul.mubr.f32.gmra.mrb[0].mxu0 %v407
      %v658 = vpop.f32.mrb[0].mxu0
      %v659 = vadd.f32 %v367, %v658
      %v660 = vpop.f32.mrb[0].mxu0
      %661 = vmatprep.mubr.f32.mxu0 0.0
      %662 = vmatmul.mubr.f32.gmra.mrb[0].mxu0 %v410
      %v663 = vpop.f32.mrb[0].mxu0
      %v664 = vadd.f32 %v367, %v663
      %v665 = vpop.f32.mrb[0].mxu0
      %666 = vmatprep.mubr.f32.mxu0 0.0
      %667 = vmatmul.mubr.f32.gmra.mrb[0].mxu0 %v413
      %v668 = vpop.f32.mrb[0].mxu0
      %v669 = vadd.f32 %v367, %v668
      %v670 = vpop.f32.mrb[0].mxu0
      %671 = vmatprep.mubr.f32.mxu0 0.0
      %672 = vmatmul.mubr.f32.gmra.mrb[0].mxu0 %v416
      %v673 = vpop.f32.mrb[0].mxu0
      %v674 = vadd.f32 %v367, %v673
      %v675 = vpop.f32.mrb[0].mxu0
      %676 = vmatprep.mubr.f32.mxu0 0.0
      %677 = vmatmul.mubr.f32.gmra.mrb[0].mxu0 %v419
      %v678 = vpop.f32.mrb[0].mxu0
      %v679 = vadd.f32 %v367, %v678
      %v680 = vpop.f32.mrb[0].mxu0
      %681 = vmatprep.mubr.f32.mxu0 0.0
      %682 = vmatmul.mubr.f32.gmra.mrb[0].mxu0 %v422
      %v683 = vpop.f32.mrb[0].mxu0
      %v684 = vadd.f32 %v367, %v683
      %v685 = vpop.f32.mrb[0].mxu0
      %686 = vmatprep.mubr.f32.mxu0 0.0
      %687 = vmatmul.mubr.f32.gmra.mrb[0].mxu0 %v425
      %v688 = vpop.f32.mrb[0].mxu0
      %v689 = vadd.f32 %v367, %v688
      %v690 = vpop.f32.mrb[0].mxu0
      %691 = vmatprep.mubr.f32.mxu0 0.0
      %692 = vmatmul.mubr.f32.gmra.mrb[0].mxu0 %v428
      %v693 = vpop.f32.mrb[0].mxu0
      %v694 = vadd.f32 %v367, %v693
      %v695 = vpop.f32.mrb[0].mxu0
      %696 = vmatprep.mubr.f32.mxu0 0.0
      %697 = vmatmul.mubr.f32.gmra.mrb[0].mxu0 %v431
      %v698 = vpop.f32.mrb[0].mxu0
      %v699 = vadd.f32 %v367, %v698
      %v700 = vpop.f32.mrb[0].mxu0
      %701 = vmatprep.mubr.f32.mxu0 0.0
      %702 = vmatmul.mubr.f32.gmra.mrb[0].mxu0 %v434
      %v703 = vpop.f32.mrb[0].mxu0
      %v704 = vadd.f32 %v367, %v703
      %v705 = vpop.f32.mrb[0].mxu0
      %706 = vmatprep.mubr.f32.mxu0 0.0
      %707 = vmatmul.mubr.f32.gmra.mrb[0].mxu0 %v437
      %v708 = vpop.f32.mrb[0].mxu0
      %v709 = vadd.f32 %v367, %v708
      %v710 = vpop.f32.mrb[0].mxu0
      %711 = vmatprep.mubr.f32.mxu0 0.0
      %712 = vmatmul.mubr.f32.gmra.mrb[0].mxu0 %v440
      %v713 = vpop.f32.mrb[0].mxu0
      %v714 = vadd.f32 %v367, %v713
      %v715 = vpop.f32.mrb[0].mxu0
      %716 = vmatprep.mubr.f32.mxu0 0.0
      %717 = vmatmul.mubr.f32.gmra.mrb[0].mxu0 %v443
      %v718 = vpop.f32.mrb[0].mxu0
      %v719 = vadd.f32 %v367, %v718
      %v720 = vpop.f32.mrb[0].mxu0
      %721 = vmatprep.mubr.f32.mxu0 0.0
      %722 = vmatmul.mubr.f32.gmra.mrb[0].mxu0 %v446
      %v723 = vpop.f32.mrb[0].mxu0
      %v724 = vadd.f32 %v367, %v723
      %v725 = vpop.f32.mrb[0].mxu0
      %726 = vmatprep.mubr.f32.mxu0 0.0
      %727 = vmatmul.mubr.f32.gmra.mrb[0].mxu0 %v449
      %v728 = vpop.f32.mrb[0].mxu0
      %v729 = vadd.f32 %v367, %v728
      %v730 = vpop.f32.mrb[0].mxu0
      %731 = vmatprep.mubr.f32.mxu0 0.0
      %732 = vmatmul.mubr.f32.gmra.mrb[0].mxu0 %v452
      %v733 = vpop.f32.mrb[0].mxu0
      %v734 = vadd.f32 %v367, %v733
      %v735 = vpop.f32.mrb[0].mxu0
      %736 = vmatprep.mubr.f32.mxu0 0.0
      %737 = vmatmul.mubr.f32.gmra.mrb[0].mxu0 %v455
      %v738 = vpop.f32.mrb[0].mxu0
      %v739 = vadd.f32 %v367, %v738
      %v740 = vpop.f32.mrb[0].mxu0
      %741 = vmatprep.mubr.f32.mxu0 0.0
      %742 = vmatmul.mubr.f32.gmra.mrb[0].mxu0 %v458
      %v743 = vpop.f32.mrb[0].mxu0
      %v744 = vadd.f32 %v367, %v743
      %v745 = vpop.f32.mrb[0].mxu0
      %746 = vmatprep.mubr.f32.mxu0 0.0
      %747 = vmatmul.mubr.f32.gmra.mrb[0].mxu0 %v461
      %v748 = vpop.f32.mrb[0].mxu0
      %v749 = vadd.f32 %v367, %v748
      %v750 = vpop.f32.mrb[0].mxu0
      %751 = vmatprep.mubr.f32.mxu0 0.0
      %752 = vmatmul.mubr.f32.gmra.mrb[0].mxu0 %v464
      %v753 = vpop.f32.mrb[0].mxu0
      %v754 = vadd.f32 %v367, %v753
      %v755 = vpop.f32.mrb[0].mxu0
      %756 = vmatprep.mubr.f32.mxu0 0.0
      %757 = vmatmul.mubr.f32.gmra.mrb[0].mxu0 %v467
      %v758 = vpop.f32.mrb[0].mxu0
      %v759 = vadd.f32 %v367, %v758
      %v760 = vpop.f32.mrb[0].mxu0
      %761 = vmatprep.mubr.f32.mxu0 0.0
      %762 = vmatmul.mubr.f32.gmra.mrb[0].mxu0 %v470
      %v763 = vpop.f32.mrb[0].mxu0
      %v764 = vadd.f32 %v367, %v763
      %v765 = vpop.f32.mrb[0].mxu0
      %766 = vmatprep.mubr.f32.mxu0 0.0
      %767 = vmatmul.mubr.f32.gmra.mrb[0].mxu0 %v473
      %v768 = vpop.f32.mrb[0].mxu0
      %v769 = vadd.f32 %v367, %v768
      %v770 = vpop.f32.mrb[0].mxu0
      %771 = vmatprep.mubr.f32.mxu0 0.0
      %772 = vmatmul.mubr.f32.gmra.mrb[0].mxu0 %v476
      %v773 = vpop.f32.mrb[0].mxu0
      %v774 = vadd.f32 %v367, %v773
      %v775 = vpop.f32.mrb[0].mxu0
      %776 = vmatprep.mubr.f32.mxu0 0.0
      %777 = vmatmul.mubr.f32.gmra.mrb[0].mxu0 %v479
      %v778 = vpop.f32.mrb[0].mxu0
      %v779 = vadd.f32 %v367, %v778
      %v780 = vpop.f32.mrb[0].mxu0
      %781 = vmatprep.mubr.f32.mxu0 0.0
      %782 = vmatmul.mubr.f32.gmra.mrb[0].mxu0 %v482
      %v783 = vpop.f32.mrb[0].mxu0
      %v784 = vadd.f32 %v367, %v783
      %v785 = vpop.f32.mrb[0].mxu0
      %786 = vmatprep.mubr.f32.mxu0 0.0
      %787 = vmatmul.mubr.f32.gmra.mrb[0].mxu0 %v485
      %v788 = vpop.f32.mrb[0].mxu0
      %v789 = vadd.f32 %v367, %v788
      %v790 = vpop.f32.mrb[0].mxu0
      %791 = vmatprep.mubr.f32.mxu0 0.0
      %792 = vmatmul.mubr.f32.gmra.mrb[0].mxu0 %v488
      %v793 = vpop.f32.mrb[0].mxu0
      %v794 = vadd.f32 %v367, %v793
      %v795 = vpop.f32.mrb[0].mxu0
      %796 = vmatprep.mubr.f32.mxu0 0.0
      %797 = vmatmul.mubr.f32.gmra.mrb[0].mxu0 %v491
      %v798 = vpop.f32.mrb[0].mxu0
      %v799 = vadd.f32 %v367, %v798
      %v800 = vpop.f32.mrb[0].mxu0
      %801 = vmatprep.mubr.f32.mxu0 0.0
      %802 = vmatmul.mubr.f32.gmra.mrb[0].mxu0 %v494
      %v803 = vpop.f32.mrb[0].mxu0
      %v804 = vadd.f32 %v367, %v803
      %v805 = vpop.f32.mrb[0].mxu0
      %806 = vmatprep.mubr.f32.mxu0 0.0
      %807 = vmatmul.mubr.f32.gmra.mrb[0].mxu0 %v497
      %v808 = vpop.f32.mrb[0].mxu0
      %v809 = vadd.f32 %v367, %v808
      %v810 = vpop.f32.mrb[0].mxu0
      %811 = vmatprep.mubr.f32.mxu0 0.0
      %812 = vmatmul.mubr.f32.gmra.mrb[0].mxu0 %v500
      %v813 = vpop.f32.mrb[0].mxu0
      %v814 = vadd.f32 %v367, %v813
      %v815 = vpop.f32.mrb[0].mxu0
      %816 = vmatprep.mubr.f32.mxu0 0.0
      %817 = vmatmul.mubr.f32.gmra.mrb[0].mxu0 %v503
      %v818 = vpop.f32.mrb[0].mxu0
      %v819 = vadd.f32 %v367, %v818
      %v820 = vpop.f32.mrb[0].mxu0
      %821 = vmatprep.mubr.f32.mxu0 0.0
      %822 = vmatmul.mubr.f32.gmra.mrb[0].mxu0 %v506
      %v823 = vpop.f32.mrb[0].mxu0
      %v824 = vadd.f32 %v367, %v823
      %v825 = vpop.f32.mrb[0].mxu0
      %826 = vmatprep.mubr.f32.mxu0 0.0
      %827 = vmatmul.mubr.f32.gmra.mrb[0].mxu0 %v509
      %v828 = vpop.f32.mrb[0].mxu0
      %v829 = vadd.f32 %v367, %v828
      %v830 = vpop.f32.mrb[0].mxu0
      %831 = vmatprep.mubr.f32.mxu0 0.0
      %832 = vmatmul.mubr.f32.gmra.mrb[0].mxu0 %v512
      %v833 = vpop.f32.mrb[0].mxu0
      %v834 = vadd.f32 %v367, %v833
      %v835 = vpop.f32.mrb[0].mxu0
      %836 = vmatprep.mubr.f32.mxu0 0.0
      %837 = vmatmul.mubr.f32.gmra.mrb[0].mxu0 %v515
      %v838 = vpop.f32.mrb[0].mxu0
      %v839 = vadd.f32 %v367, %v838
      %v840 = vpop.f32.mrb[0].mxu0
      %841 = vmatprep.mubr.f32.mxu0 0.0
      %842 = vmatmul.mubr.f32.gmra.mrb[0].mxu0 %v518
      %v843 = vpop.f32.mrb[0].mxu0
      %v844 = vadd.f32 %v367, %v843
      %v845 = vpop.f32.mrb[0].mxu0
      %846 = vmatprep.mubr.f32.mxu0 0.0
      %847 = vmatmul.mubr.f32.gmra.mrb[0].mxu0 %v521
      %v848 = vpop.f32.mrb[0].mxu0
      %v849 = vadd.f32 %v367, %v848
      %v850 = vpop.f32.mrb[0].mxu0
      %851 = vmatprep.mubr.f32.mxu0 0.0
      %852 = vmatmul.mubr.f32.gmra.mrb[0].mxu0 %v524
      %v853 = vpop.f32.mrb[0].mxu0
      %v854 = vadd.f32 %v367, %v853
      %v855 = vpop.f32.mrb[0].mxu0
      %856 = vmatprep.mubr.f32.mxu0 0.0
      %857 = vmatmul.mubr.f32.gmra.mrb[0].mxu0 %v527
      %v858 = vpop.f32.mrb[0].mxu0
      %v859 = vadd.f32 %v367, %v858
      %v860 = vpop.f32.mrb[0].mxu0
      %861 = vmatprep.mubr.f32.mxu0 0.0
      %862 = vmatmul.mubr.f32.gmra.mrb[0].mxu0 %v530
      %v863 = vpop.f32.mrb[0].mxu0
      %v864 = vadd.f32 %v367, %v863
      %v865 = vpop.f32.mrb[0].mxu0
      %866 = vdwg.mxu0
      %v867 = vmax.f32 %v599, 0.0
      %v868 = vmax.f32 %v604, 0.0
      %v869 = vmax.f32 %v609, 0.0
      %v870 = vmax.f32 %v614, 0.0
      %v871 = vmax.f32 %v619, 0.0
      %v872 = vmax.f32 %v624, 0.0
      %v873 = vmax.f32 %v629, 0.0
      %v874 = vmax.f32 %v634, 0.0
      %v875 = vmax.f32 %v639, 0.0
      %v876 = vmax.f32 %v644, 0.0
      %v877 = vmax.f32 %v649, 0.0
      %v878 = vmax.f32 %v654, 0.0
      %v879 = vmax.f32 %v659, 0.0
      %v880 = vmax.f32 %v664, 0.0
      %v881 = vmax.f32 %v669, 0.0
      %v882 = vmax.f32 %v674, 0.0
      %v883 = vmax.f32 %v679, 0.0
      %v884 = vmax.f32 %v684, 0.0
      %v885 = vmax.f32 %v689, 0.0
      %v886 = vmax.f32 %v694, 0.0
      %v887 = vmax.f32 %v699, 0.0
      %v888 = vmax.f32 %v704, 0.0
      %v889 = vmax.f32 %v709, 0.0
      %v890 = vmax.f32 %v714, 0.0
      %v891 = vmax.f32 %v719, 0.0
      %v892 = vmax.f32 %v724, 0.0
      %v893 = vmax.f32 %v729, 0.0
      %v894 = vmax.f32 %v734, 0.0
      %v895 = vmax.f32 %v739, 0.0
      %v896 = vmax.f32 %v744, 0.0
      %v897 = vmax.f32 %v749, 0.0
      %v898 = vmax.f32 %v754, 0.0
      %v899 = vmax.f32 %v759, 0.0
      %v900 = vmax.f32 %v764, 0.0
      %v901 = vmax.f32 %v769, 0.0
      %v902 = vmax.f32 %v774, 0.0
      %v903 = vmax.f32 %v779, 0.0
      %v904 = vmax.f32 %v784, 0.0
      %v905 = vmax.f32 %v789, 0.0
      %v906 = vmax.f32 %v794, 0.0
      %v907 = vmax.f32 %v799, 0.0
      %v908 = vmax.f32 %v804, 0.0
      %v909 = vmax.f32 %v809, 0.0
      %v910 = vmax.f32 %v814, 0.0
      %v911 = vmax.f32 %v819, 0.0
      %v912 = vmax.f32 %v824, 0.0
      %v913 = vmax.f32 %v829, 0.0
      %v914 = vmax.f32 %v834, 0.0
      %v915 = vmax.f32 %v839, 0.0
      %v916 = vmax.f32 %v844, 0.0
      %v917 = vmax.f32 %v849, 0.0
      %v918 = vmax.f32 %v854, 0.0
      %v919 = vmax.f32 %v859, 0.0
      %v920 = vmax.f32 %v864, 0.0
      %v921 = vmin.f32 %v867, 6.0
      %v922 = vmin.f32 %v868, 6.0
      %v923 = vmin.f32 %v869, 6.0
      %v924 = vmin.f32 %v870, 6.0
      %v925 = vmin.f32 %v871, 6.0
      %v926 = vmin.f32 %v872, 6.0
      %v927 = vmin.f32 %v873, 6.0
      %v928 = vmin.f32 %v874, 6.0
      %v929 = vmin.f32 %v875, 6.0
      %v930 = vmin.f32 %v876, 6.0
      %v931 = vmin.f32 %v877, 6.0
      %v932 = vmin.f32 %v878, 6.0
      %v933 = vmin.f32 %v879, 6.0
      %v934 = vmin.f32 %v880, 6.0
      %v935 = vmin.f32 %v881, 6.0
      %v936 = vmin.f32 %v882, 6.0
      %v937 = vmin.f32 %v883, 6.0
      %v938 = vmin.f32 %v884, 6.0
      %v939 = vmin.f32 %v885, 6.0
      %v940 = vmin.f32 %v886, 6.0
      %v941 = vmin.f32 %v887, 6.0
      %v942 = vmin.f32 %v888, 6.0
      %v943 = vmin.f32 %v889, 6.0
      %v944 = vmin.f32 %v890, 6.0
      %v945 = vmin.f32 %v891, 6.0
      %v946 = vmin.f32 %v892, 6.0
      %v947 = vmin.f32 %v893, 6.0
      %v948 = vmin.f32 %v894, 6.0
      %v949 = vmin.f32 %v895, 6.0
      %v950 = vmin.f32 %v896, 6.0
      %v951 = vmin.f32 %v897, 6.0
      %v952 = vmin.f32 %v898, 6.0
      %v953 = vmin.f32 %v899, 6.0
      %v954 = vmin.f32 %v900, 6.0
      %v955 = vmin.f32 %v901, 6.0
      %v956 = vmin.f32 %v902, 6.0
      %v957 = vmin.f32 %v903, 6.0
      %v958 = vmin.f32 %v904, 6.0
      %v959 = vmin.f32 %v905, 6.0
      %v960 = vmin.f32 %v906, 6.0
      %v961 = vmin.f32 %v907, 6.0
      %v962 = vmin.f32 %v908, 6.0
      %v963 = vmin.f32 %v909, 6.0
      %v964 = vmin.f32 %v910, 6.0
      %v965 = vmin.f32 %v911, 6.0
      %v966 = vmin.f32 %v912, 6.0
      %v967 = vmin.f32 %v913, 6.0
      %v968 = vmin.f32 %v914, 6.0
      %v969 = vmin.f32 %v915, 6.0
      %v970 = vmin.f32 %v916, 6.0
      %v971 = vmin.f32 %v917, 6.0
      %v972 = vmin.f32 %v918, 6.0
      %v973 = vmin.f32 %v919, 6.0
      %v974 = vmin.f32 %v920, 6.0
      %v975 = vlaneseq
      %v976 = vshrl.u32 %v975, 7
      %v977 = vadd.s32 %v976, 8
      %v978 = vadd.s32 %v976, 16
      %vm979 = vcmp.ge.s32.totalorder %v976, 1
      %vm980 = vcmp.ge.s32.totalorder %v977, 1
      %vm981 = vcmp.ge.s32.totalorder %v978, 1
      %vm982 = vcmp.le.s32.totalorder %v976, 16
      %vm983 = vcmp.le.s32.totalorder %v977, 16
      %vm984 = vcmp.le.s32.totalorder %v978, 16
      %vm985 = vmand %vm979, %vm982
      %vm986 = vmand %vm980, %vm983
      %vm987 = vmand %vm981, %vm984
      %v988 = vsel %vm985, 1.0, 0.0
      %v989 = vsel %vm986, 1.0, 0.0
      %v990 = vsel %vm987, 1.0, 0.0
      %v991 = vmul.f32 %v921, %v988
      %v992 = vmul.f32 %v922, %v989
      %v993 = vmul.f32 %v923, %v990
      %v994 = vmul.f32 %v924, %v988
      %v995 = vmul.f32 %v925, %v989
      %v996 = vmul.f32 %v926, %v990
      %v997 = vmul.f32 %v927, %v988
      %v998 = vmul.f32 %v928, %v989
      %v999 = vmul.f32 %v929, %v990
      %v1000 = vmul.f32 %v930, %v988
      %v1001 = vmul.f32 %v931, %v989
      %v1002 = vmul.f32 %v932, %v990
      %v1003 = vmul.f32 %v933, %v988
      %v1004 = vmul.f32 %v934, %v989
      %v1005 = vmul.f32 %v935, %v990
      %v1006 = vmul.f32 %v936, %v988
      %v1007 = vmul.f32 %v937, %v989
      %v1008 = vmul.f32 %v938, %v990
      %v1009 = vmul.f32 %v939, %v988
      %v1010 = vmul.f32 %v940, %v989
      %v1011 = vmul.f32 %v941, %v990
      %v1012 = vmul.f32 %v942, %v988
      %v1013 = vmul.f32 %v943, %v989
      %v1014 = vmul.f32 %v944, %v990
      %v1015 = vmul.f32 %v945, %v988
      %v1016 = vmul.f32 %v946, %v989
      %v1017 = vmul.f32 %v947, %v990
      %v1018 = vmul.f32 %v948, %v988
      %v1019 = vmul.f32 %v949, %v989
      %v1020 = vmul.f32 %v950, %v990
      %v1021 = vmul.f32 %v951, %v988
      %v1022 = vmul.f32 %v952, %v989
      %v1023 = vmul.f32 %v953, %v990
      %v1024 = vmul.f32 %v954, %v988
      %v1025 = vmul.f32 %v955, %v989
      %v1026 = vmul.f32 %v956, %v990
      %v1027 = vmul.f32 %v957, %v988
      %v1028 = vmul.f32 %v958, %v989
      %v1029 = vmul.f32 %v959, %v990
      %v1030 = vmul.f32 %v960, %v988
      %v1031 = vmul.f32 %v961, %v989
      %v1032 = vmul.f32 %v962, %v990
      %v1033 = vmul.f32 %v963, %v988
      %v1034 = vmul.f32 %v964, %v989
      %v1035 = vmul.f32 %v965, %v990
      %v1036 = vmul.f32 %v966, %v988
      %v1037 = vmul.f32 %v967, %v989
      %v1038 = vmul.f32 %v968, %v990
      %v1039 = vmul.f32 %v969, %v988
      %v1040 = vmul.f32 %v970, %v989
      %v1041 = vmul.f32 %v971, %v990
      %v1042 = vmul.f32 %v972, %v988
      %v1043 = vmul.f32 %v973, %v989
      %v1044 = vmul.f32 %v974, %v990
      %vm1045 = vcmask 261120
      %1046 = vst.msk [vmem:[#allocation2] sm:$0xff] %vm1045, %v991
      %1047 = vst.msk [vmem:[#allocation2 + $0x8] sm:$0xff] %vm1045, %v992
      %1048 = vst.msk [vmem:[#allocation2 + $0x10] sm:$0xff] %vm1045, %v993
      %1049 = vst.msk [vmem:[#allocation2 + $0x18] sm:$0xff] %vm1045, %v994
      %1050 = vst.msk [vmem:[#allocation2 + $0x20] sm:$0xff] %vm1045, %v995
      %1051 = vst.msk [vmem:[#allocation2 + $0x28] sm:$0xff] %vm1045, %v996
      %1052 = vst.msk [vmem:[#allocation2 + $0x30] sm:$0xff] %vm1045, %v997
      %1053 = vst.msk [vmem:[#allocation2 + $0x38] sm:$0xff] %vm1045, %v998
      %1054 = vst.msk [vmem:[#allocation2 + $0x40] sm:$0xff] %vm1045, %v999
      %1055 = vst.msk [vmem:[#allocation2 + $0x48] sm:$0xff] %vm1045, %v1000
      %1056 = vst.msk [vmem:[#allocation2 + $0x50] sm:$0xff] %vm1045, %v1001
      %1057 = vst.msk [vmem:[#allocation2 + $0x58] sm:$0xff] %vm1045, %v1002
      %1058 = vst.msk [vmem:[#allocation2 + $0x60] sm:$0xff] %vm1045, %v1003
      %1059 = vst.msk [vmem:[#allocation2 + $0x68] sm:$0xff] %vm1045, %v1004
      %1060 = vst.msk [vmem:[#allocation2 + $0x70] sm:$0xff] %vm1045, %v1005
      %1061 = vst.msk [vmem:[#allocation2 + $0x78] sm:$0xff] %vm1045, %v1006
      %1062 = vst.msk [vmem:[#allocation2 + $0x80] sm:$0xff] %vm1045, %v1007
      %1063 = vst.msk [vmem:[#allocation2 + $0x88] sm:$0xff] %vm1045, %v1008
      %1064 = vst.msk [vmem:[#allocation2 + $0x90] sm:$0xff] %vm1045, %v1009
      %1065 = vst.msk [vmem:[#allocation2 + $0x98] sm:$0xff] %vm1045, %v1010
      %1066 = vst.msk [vmem:[#allocation2 + $0xa0] sm:$0xff] %vm1045, %v1011
      %1067 = vst.msk [vmem:[#allocation2 + $0xa8] sm:$0xff] %vm1045, %v1012
      %1068 = vst.msk [vmem:[#allocation2 + $0xb0] sm:$0xff] %vm1045, %v1013
      %1069 = vst.msk [vmem:[#allocation2 + $0xb8] sm:$0xff] %vm1045, %v1014
      %1070 = vst.msk [vmem:[#allocation2 + $0xc0] sm:$0xff] %vm1045, %v1015
      %1071 = vst.msk [vmem:[#allocation2 + $0xc8] sm:$0xff] %vm1045, %v1016
      %1072 = vst.msk [vmem:[#allocation2 + $0xd0] sm:$0xff] %vm1045, %v1017
      %1073 = vst.msk [vmem:[#allocation2 + $0xd8] sm:$0xff] %vm1045, %v1018
      %1074 = vst.msk [vmem:[#allocation2 + $0xe0] sm:$0xff] %vm1045, %v1019
      %1075 = vst.msk [vmem:[#allocation2 + $0xe8] sm:$0xff] %vm1045, %v1020
      %1076 = vst.msk [vmem:[#allocation2 + $0xf0] sm:$0xff] %vm1045, %v1021
      %1077 = vst.msk [vmem:[#allocation2 + $0xf8] sm:$0xff] %vm1045, %v1022
      %1078 = vst.msk [vmem:[#allocation2 + $0x100] sm:$0xff] %vm1045, %v1023
      %1079 = vst.msk [vmem:[#allocation2 + $0x108] sm:$0xff] %vm1045, %v1024
      %1080 = vst.msk [vmem:[#allocation2 + $0x110] sm:$0xff] %vm1045, %v1025
      %1081 = vst.msk [vmem:[#allocation2 + $0x118] sm:$0xff] %vm1045, %v1026
      %1082 = vst.msk [vmem:[#allocation2 + $0x120] sm:$0xff] %vm1045, %v1027
      %1083 = vst.msk [vmem:[#allocation2 + $0x128] sm:$0xff] %vm1045, %v1028
      %1084 = vst.msk [vmem:[#allocation2 + $0x130] sm:$0xff] %vm1045, %v1029
      %1085 = vst.msk [vmem:[#allocation2 + $0x138] sm:$0xff] %vm1045, %v1030
      %1086 = vst.msk [vmem:[#allocation2 + $0x140] sm:$0xff] %vm1045, %v1031
      %1087 = vst.msk [vmem:[#allocation2 + $0x148] sm:$0xff] %vm1045, %v1032
      %1088 = vst.msk [vmem:[#allocation2 + $0x150] sm:$0xff] %vm1045, %v1033
      %1089 = vst.msk [vmem:[#allocation2 + $0x158] sm:$0xff] %vm1045, %v1034
      %1090 = vst.msk [vmem:[#allocation2 + $0x160] sm:$0xff] %vm1045, %v1035
      %1091 = vst.msk [vmem:[#allocation2 + $0x168] sm:$0xff] %vm1045, %v1036
      %1092 = vst.msk [vmem:[#allocation2 + $0x170] sm:$0xff] %vm1045, %v1037
      %1093 = vst.msk [vmem:[#allocation2 + $0x178] sm:$0xff] %vm1045, %v1038
      %1094 = vst.msk [vmem:[#allocation2 + $0x180] sm:$0xff] %vm1045, %v1039
      %1095 = vst.msk [vmem:[#allocation2 + $0x188] sm:$0xff] %vm1045, %v1040
      %1096 = vst.msk [vmem:[#allocation2 + $0x190] sm:$0xff] %vm1045, %v1041
      %1097 = vst.msk [vmem:[#allocation2 + $0x198] sm:$0xff] %vm1045, %v1042
      %1098 = vst.msk [vmem:[#allocation2 + $0x1a0] sm:$0xff] %vm1045, %v1043
      %1099 = vst.msk [vmem:[#allocation2 + $0x1a8] sm:$0xff] %vm1045, %v1044
      %p1100 = scmp.eq.s32.totalorder %s304, 0
      // Predicated region
      $region49: #{tpu_custom_call.1} parent=47 // pred_check
        %p1101 = pneg %p1100
      $region50: #{tpu_custom_call.1} parent=47 // pred_check_branch
        %1103 = sbr.rel (%p1101) target = $region52
      $region51: #{tpu_custom_call.1} parent=47 // pred_region
        %1104 = vst.msk [vmem:[#allocation2] sm:$0xff] %vm1045, 0.0
        %1105 = vst.msk [vmem:[#allocation2 + $0x8] sm:$0xff] %vm1045, 0.0
        %1106 = vst.msk [vmem:[#allocation2 + $0x10] sm:$0xff] %vm1045, 0.0
      $region52: #{tpu_custom_call.1} parent=47 // pred_fallthru
        _
      %s1107 = sadd.s32 %s304, 18
      %p1108 = scmp.eq.s32.totalorder %s1107, 18
      // Predicated region
      $region53: #{tpu_custom_call.1} parent=47 // pred_check
        %p1109 = pneg %p1108
      $region54: #{tpu_custom_call.1} parent=47 // pred_check_branch
        %1111 = sbr.rel (%p1109) target = $region56
      $region55: #{tpu_custom_call.1} parent=47 // pred_region
        %s1112 = scalar_lea.vmem [#allocation2], 408
        %1113 = vst.msk [vmem:[%s1112] sm:$0xff] %vm1045, 0.0
        %1114 = vst.msk [vmem:[%s1112 + $0x8] sm:$0xff] %vm1045, 0.0
        %1115 = vst.msk [vmem:[%s1112 + $0x10] sm:$0xff] %vm1045, 0.0
      $region56: #{tpu_custom_call.1} parent=47 // pred_fallthru
        _
      %v1116 = vld [vmem:[#allocation2] sm:$0xff]
      %v1117 = vld [vmem:[#allocation2 + $0x8] sm:$0xff]
      %v1118 = vld [vmem:[#allocation2 + $0x18] sm:$0xff]
      %v1119 = vld [vmem:[#allocation2 + $0x20] sm:$0xff]
      %v1120 = vld [vmem:[#allocation2 + $0x30] sm:$0xff]
      %v1121 = vld [vmem:[#allocation2 + $0x38] sm:$0xff]
      %v1122 = vld [vmem:[#allocation2 + $0x48] sm:$0xff]
      %v1123 = vld [vmem:[#allocation2 + $0x50] sm:$0xff]
      %v1124 = vld [vmem:[#allocation2 + $0x60] sm:$0xff]
      %v1125 = vld [vmem:[#allocation2 + $0x68] sm:$0xff]
      %v1126 = vld [vmem:[#allocation2 + $0x78] sm:$0xff]
      %v1127 = vld [vmem:[#allocation2 + $0x80] sm:$0xff]
      %v1128 = vld [vmem:[#allocation2 + $0x90] sm:$0xff]
      %v1129 = vld [vmem:[#allocation2 + $0x98] sm:$0xff]
      %v1130 = vld [vmem:[#allocation2 + $0xa8] sm:$0xff]
      %v1131 = vld [vmem:[#allocation2 + $0xb0] sm:$0xff]
      %v1132 = vld [vmem:[#allocation2 + $0xc0] sm:$0xff]
      %v1133 = vld [vmem:[#allocation2 + $0xc8] sm:$0xff]
      %v1134 = vld [vmem:[#allocation2 + $0xd8] sm:$0xff]
      %v1135 = vld [vmem:[#allocation2 + $0xe0] sm:$0xff]
      %v1136 = vld [vmem:[#allocation2 + $0xf0] sm:$0xff]
      %v1137 = vld [vmem:[#allocation2 + $0xf8] sm:$0xff]
      %v1138 = vld [vmem:[#allocation2 + $0x108] sm:$0xff]
      %v1139 = vld [vmem:[#allocation2 + $0x110] sm:$0xff]
      %v1140 = vld [vmem:[#allocation2 + $0x120] sm:$0xff]
      %v1141 = vld [vmem:[#allocation2 + $0x128] sm:$0xff]
      %v1142 = vld [vmem:[#allocation2 + $0x138] sm:$0xff]
      %v1143 = vld [vmem:[#allocation2 + $0x140] sm:$0xff]
      %v1144 = vld [vmem:[#allocation2 + $0x150] sm:$0xff]
      %v1145 = vld [vmem:[#allocation2 + $0x158] sm:$0xff]
      %v1146 = vld [vmem:[#allocation2 + $0x168] sm:$0xff]
      %v1147 = vld [vmem:[#allocation2 + $0x170] sm:$0xff]
      %v1148 = vld [vmem:[%s3] sm:$0x1]
      %v1149 = vlaneseq
      %v1150 = vshrl.u32 %v1149, 7
      %v1151 = vsub.s32 0, %v1150
      %v1152 = vrot.slane %v1148, %v1151
      %v1153 = vmul.f32 %v1116, %v1152
      %v1154 = vmul.f32 %v1117, %v1152
      %v1155 = vmul.f32 %v1118, %v1152
      %v1156 = vmul.f32 %v1119, %v1152
      %v1157 = vmul.f32 %v1120, %v1152
      %v1158 = vmul.f32 %v1121, %v1152
      %v1159 = vmul.f32 %v1122, %v1152
      %v1160 = vmul.f32 %v1123, %v1152
      %v1161 = vmul.f32 %v1124, %v1152
      %v1162 = vmul.f32 %v1125, %v1152
      %v1163 = vmul.f32 %v1126, %v1152
      %v1164 = vmul.f32 %v1127, %v1152
      %v1165 = vmul.f32 %v1128, %v1152
      %v1166 = vmul.f32 %v1129, %v1152
      %v1167 = vmul.f32 %v1130, %v1152
      %v1168 = vmul.f32 %v1131, %v1152
      %v1169 = vmul.f32 %v1132, %v1152
      %v1170 = vmul.f32 %v1133, %v1152
      %v1171 = vmul.f32 %v1134, %v1152
      %v1172 = vmul.f32 %v1135, %v1152
      %v1173 = vmul.f32 %v1136, %v1152
      %v1174 = vmul.f32 %v1137, %v1152
      %v1175 = vmul.f32 %v1138, %v1152
      %v1176 = vmul.f32 %v1139, %v1152
      %v1177 = vmul.f32 %v1140, %v1152
      %v1178 = vmul.f32 %v1141, %v1152
      %v1179 = vmul.f32 %v1142, %v1152
      %v1180 = vmul.f32 %v1143, %v1152
      %v1181 = vmul.f32 %v1144, %v1152
      %v1182 = vmul.f32 %v1145, %v1152
      %v1183 = vmul.f32 %v1146, %v1152
      %v1184 = vmul.f32 %v1147, %v1152
      %v1185 = vadd.f32 %v1153, 0.0
      %v1186 = vadd.f32 %v1154, 0.0
      %v1187 = vadd.f32 %v1155, 0.0
      %v1188 = vadd.f32 %v1156, 0.0
      %v1189 = vadd.f32 %v1157, 0.0
      %v1190 = vadd.f32 %v1158, 0.0
      %v1191 = vadd.f32 %v1159, 0.0
      %v1192 = vadd.f32 %v1160, 0.0
      %v1193 = vadd.f32 %v1161, 0.0
      %v1194 = vadd.f32 %v1162, 0.0
      %v1195 = vadd.f32 %v1163, 0.0
      %v1196 = vadd.f32 %v1164, 0.0
      %v1197 = vadd.f32 %v1165, 0.0
      %v1198 = vadd.f32 %v1166, 0.0
      %v1199 = vadd.f32 %v1167, 0.0
      %v1200 = vadd.f32 %v1168, 0.0
      %v1201 = vadd.f32 %v1169, 0.0
      %v1202 = vadd.f32 %v1170, 0.0
      %v1203 = vadd.f32 %v1171, 0.0
      %v1204 = vadd.f32 %v1172, 0.0
      %v1205 = vadd.f32 %v1173, 0.0
      %v1206 = vadd.f32 %v1174, 0.0
      %v1207 = vadd.f32 %v1175, 0.0
      %v1208 = vadd.f32 %v1176, 0.0
      %v1209 = vadd.f32 %v1177, 0.0
      %v1210 = vadd.f32 %v1178, 0.0
      %v1211 = vadd.f32 %v1179, 0.0
      %v1212 = vadd.f32 %v1180, 0.0
      %v1213 = vadd.f32 %v1181, 0.0
      %v1214 = vadd.f32 %v1182, 0.0
      %v1215 = vadd.f32 %v1183, 0.0
      %v1216 = vadd.f32 %v1184, 0.0
      %v1217 = vld [vmem:[#allocation2 + $0x1] sm:$0xff]
      %v1218 = vld [vmem:[#allocation2 + $0x9] sm:$0xff]
      %v1219 = vld [vmem:[#allocation2 + $0x19] sm:$0xff]
      %v1220 = vld [vmem:[#allocation2 + $0x21] sm:$0xff]
      %v1221 = vld [vmem:[#allocation2 + $0x31] sm:$0xff]
      %v1222 = vld [vmem:[#allocation2 + $0x39] sm:$0xff]
      %v1223 = vld [vmem:[#allocation2 + $0x49] sm:$0xff]
      %v1224 = vld [vmem:[#allocation2 + $0x51] sm:$0xff]
      %v1225 = vld [vmem:[#allocation2 + $0x61] sm:$0xff]
      %v1226 = vld [vmem:[#allocation2 + $0x69] sm:$0xff]
      %v1227 = vld [vmem:[#allocation2 + $0x79] sm:$0xff]
      %v1228 = vld [vmem:[#allocation2 + $0x81] sm:$0xff]
      %v1229 = vld [vmem:[#allocation2 + $0x91] sm:$0xff]
      %v1230 = vld [vmem:[#allocation2 + $0x99] sm:$0xff]
      %v1231 = vld [vmem:[#allocation2 + $0xa9] sm:$0xff]
      %v1232 = vld [vmem:[#allocation2 + $0xb1] sm:$0xff]
      %v1233 = vld [vmem:[#allocation2 + $0xc1] sm:$0xff]
      %v1234 = vld [vmem:[#allocation2 + $0xc9] sm:$0xff]
      %v1235 = vld [vmem:[#allocation2 + $0xd9] sm:$0xff]
      %v1236 = vld [vmem:[#allocation2 + $0xe1] sm:$0xff]
      %v1237 = vld [vmem:[#allocation2 + $0xf1] sm:$0xff]
      %v1238 = vld [vmem:[#allocation2 + $0xf9] sm:$0xff]
      %v1239 = vld [vmem:[#allocation2 + $0x109] sm:$0xff]
      %v1240 = vld [vmem:[#allocation2 + $0x111] sm:$0xff]
      %v1241 = vld [vmem:[#allocation2 + $0x121] sm:$0xff]
      %v1242 = vld [vmem:[#allocation2 + $0x129] sm:$0xff]
      %v1243 = vld [vmem:[#allocation2 + $0x139] sm:$0xff]
      %v1244 = vld [vmem:[#allocation2 + $0x141] sm:$0xff]
      %v1245 = vld [vmem:[#allocation2 + $0x151] sm:$0xff]
      %v1246 = vld [vmem:[#allocation2 + $0x159] sm:$0xff]
      %v1247 = vld [vmem:[#allocation2 + $0x169] sm:$0xff]
      %v1248 = vld [vmem:[#allocation2 + $0x171] sm:$0xff]
      %v1249 = vld [vmem:[%s3 + $0x1] sm:$0x1]
      %v1250 = vlaneseq
      %v1251 = vshrl.u32 %v1250, 7
      %v1252 = vsub.s32 0, %v1251
      %v1253 = vrot.slane %v1249, %v1252
      %v1254 = vmul.f32 %v1217, %v1253
      %v1255 = vmul.f32 %v1218, %v1253
      %v1256 = vmul.f32 %v1219, %v1253
      %v1257 = vmul.f32 %v1220, %v1253
      %v1258 = vmul.f32 %v1221, %v1253
      %v1259 = vmul.f32 %v1222, %v1253
      %v1260 = vmul.f32 %v1223, %v1253
      %v1261 = vmul.f32 %v1224, %v1253
      %v1262 = vmul.f32 %v1225, %v1253
      %v1263 = vmul.f32 %v1226, %v1253
      %v1264 = vmul.f32 %v1227, %v1253
      %v1265 = vmul.f32 %v1228, %v1253
      %v1266 = vmul.f32 %v1229, %v1253
      %v1267 = vmul.f32 %v1230, %v1253
      %v1268 = vmul.f32 %v1231, %v1253
      %v1269 = vmul.f32 %v1232, %v1253
      %v1270 = vmul.f32 %v1233, %v1253
      %v1271 = vmul.f32 %v1234, %v1253
      %v1272 = vmul.f32 %v1235, %v1253
      %v1273 = vmul.f32 %v1236, %v1253
      %v1274 = vmul.f32 %v1237, %v1253
      %v1275 = vmul.f32 %v1238, %v1253
      %v1276 = vmul.f32 %v1239, %v1253
      %v1277 = vmul.f32 %v1240, %v1253
      %v1278 = vmul.f32 %v1241, %v1253
      %v1279 = vmul.f32 %v1242, %v1253
      %v1280 = vmul.f32 %v1243, %v1253
      %v1281 = vmul.f32 %v1244, %v1253
      %v1282 = vmul.f32 %v1245, %v1253
      %v1283 = vmul.f32 %v1246, %v1253
      %v1284 = vmul.f32 %v1247, %v1253
      %v1285 = vmul.f32 %v1248, %v1253
      %v1286 = vadd.f32 %v1185, %v1254
      %v1287 = vadd.f32 %v1186, %v1255
      %v1288 = vadd.f32 %v1187, %v1256
      %v1289 = vadd.f32 %v1188, %v1257
      %v1290 = vadd.f32 %v1189, %v1258
      %v1291 = vadd.f32 %v1190, %v1259
      %v1292 = vadd.f32 %v1191, %v1260
      %v1293 = vadd.f32 %v1192, %v1261
      %v1294 = vadd.f32 %v1193, %v1262
      %v1295 = vadd.f32 %v1194, %v1263
      %v1296 = vadd.f32 %v1195, %v1264
      %v1297 = vadd.f32 %v1196, %v1265
      %v1298 = vadd.f32 %v1197, %v1266
      %v1299 = vadd.f32 %v1198, %v1267
      %v1300 = vadd.f32 %v1199, %v1268
      %v1301 = vadd.f32 %v1200, %v1269
      %v1302 = vadd.f32 %v1201, %v1270
      %v1303 = vadd.f32 %v1202, %v1271
      %v1304 = vadd.f32 %v1203, %v1272
      %v1305 = vadd.f32 %v1204, %v1273
      %v1306 = vadd.f32 %v1205, %v1274
      %v1307 = vadd.f32 %v1206, %v1275
      %v1308 = vadd.f32 %v1207, %v1276
      %v1309 = vadd.f32 %v1208, %v1277
      %v1310 = vadd.f32 %v1209, %v1278
      %v1311 = vadd.f32 %v1210, %v1279
      %v1312 = vadd.f32 %v1211, %v1280
      %v1313 = vadd.f32 %v1212, %v1281
      %v1314 = vadd.f32 %v1213, %v1282
      %v1315 = vadd.f32 %v1214, %v1283
      %v1316 = vadd.f32 %v1215, %v1284
      %v1317 = vadd.f32 %v1216, %v1285
      %v1318 = vld [vmem:[#allocation2 + $0x2] sm:$0xff]
      %v1319 = vld [vmem:[#allocation2 + $0xa] sm:$0xff]
      %v1320 = vld [vmem:[#allocation2 + $0x1a] sm:$0xff]
      %v1321 = vld [vmem:[#allocation2 + $0x22] sm:$0xff]
      %v1322 = vld [vmem:[#allocation2 + $0x32] sm:$0xff]
      %v1323 = vld [vmem:[#allocation2 + $0x3a] sm:$0xff]
      %v1324 = vld [vmem:[#allocation2 + $0x4a] sm:$0xff]
      %v1325 = vld [vmem:[#allocation2 + $0x52] sm:$0xff]
      %v1326 = vld [vmem:[#allocation2 + $0x62] sm:$0xff]
      %v1327 = vld [vmem:[#allocation2 + $0x6a] sm:$0xff]
      %v1328 = vld [vmem:[#allocation2 + $0x7a] sm:$0xff]
      %v1329 = vld [vmem:[#allocation2 + $0x82] sm:$0xff]
      %v1330 = vld [vmem:[#allocation2 + $0x92] sm:$0xff]
      %v1331 = vld [vmem:[#allocation2 + $0x9a] sm:$0xff]
      %v1332 = vld [vmem:[#allocation2 + $0xaa] sm:$0xff]
      %v1333 = vld [vmem:[#allocation2 + $0xb2] sm:$0xff]
      %v1334 = vld [vmem:[#allocation2 + $0xc2] sm:$0xff]
      %v1335 = vld [vmem:[#allocation2 + $0xca] sm:$0xff]
      %v1336 = vld [vmem:[#allocation2 + $0xda] sm:$0xff]
      %v1337 = vld [vmem:[#allocation2 + $0xe2] sm:$0xff]
      %v1338 = vld [vmem:[#allocation2 + $0xf2] sm:$0xff]
      %v1339 = vld [vmem:[#allocation2 + $0xfa] sm:$0xff]
      %v1340 = vld [vmem:[#allocation2 + $0x10a] sm:$0xff]
      %v1341 = vld [vmem:[#allocation2 + $0x112] sm:$0xff]
      %v1342 = vld [vmem:[#allocation2 + $0x122] sm:$0xff]
      %v1343 = vld [vmem:[#allocation2 + $0x12a] sm:$0xff]
      %v1344 = vld [vmem:[#allocation2 + $0x13a] sm:$0xff]
      %v1345 = vld [vmem:[#allocation2 + $0x142] sm:$0xff]
      %v1346 = vld [vmem:[#allocation2 + $0x152] sm:$0xff]
      %v1347 = vld [vmem:[#allocation2 + $0x15a] sm:$0xff]
      %v1348 = vld [vmem:[#allocation2 + $0x16a] sm:$0xff]
      %v1349 = vld [vmem:[#allocation2 + $0x172] sm:$0xff]
      %v1350 = vld [vmem:[%s3 + $0x2] sm:$0x1]
      %v1351 = vlaneseq
      %v1352 = vshrl.u32 %v1351, 7
      %v1353 = vsub.s32 0, %v1352
      %v1354 = vrot.slane %v1350, %v1353
      %v1355 = vmul.f32 %v1318, %v1354
      %v1356 = vmul.f32 %v1319, %v1354
      %v1357 = vmul.f32 %v1320, %v1354
      %v1358 = vmul.f32 %v1321, %v1354
      %v1359 = vmul.f32 %v1322, %v1354
      %v1360 = vmul.f32 %v1323, %v1354
      %v1361 = vmul.f32 %v1324, %v1354
      %v1362 = vmul.f32 %v1325, %v1354
      %v1363 = vmul.f32 %v1326, %v1354
      %v1364 = vmul.f32 %v1327, %v1354
      %v1365 = vmul.f32 %v1328, %v1354
      %v1366 = vmul.f32 %v1329, %v1354
      %v1367 = vmul.f32 %v1330, %v1354
      %v1368 = vmul.f32 %v1331, %v1354
      %v1369 = vmul.f32 %v1332, %v1354
      %v1370 = vmul.f32 %v1333, %v1354
      %v1371 = vmul.f32 %v1334, %v1354
      %v1372 = vmul.f32 %v1335, %v1354
      %v1373 = vmul.f32 %v1336, %v1354
      %v1374 = vmul.f32 %v1337, %v1354
      %v1375 = vmul.f32 %v1338, %v1354
      %v1376 = vmul.f32 %v1339, %v1354
      %v1377 = vmul.f32 %v1340, %v1354
      %v1378 = vmul.f32 %v1341, %v1354
      %v1379 = vmul.f32 %v1342, %v1354
      %v1380 = vmul.f32 %v1343, %v1354
      %v1381 = vmul.f32 %v1344, %v1354
      %v1382 = vmul.f32 %v1345, %v1354
      %v1383 = vmul.f32 %v1346, %v1354
      %v1384 = vmul.f32 %v1347, %v1354
      %v1385 = vmul.f32 %v1348, %v1354
      %v1386 = vmul.f32 %v1349, %v1354
      %v1387 = vadd.f32 %v1286, %v1355
      %v1388 = vadd.f32 %v1287, %v1356
      %v1389 = vadd.f32 %v1288, %v1357
      %v1390 = vadd.f32 %v1289, %v1358
      %v1391 = vadd.f32 %v1290, %v1359
      %v1392 = vadd.f32 %v1291, %v1360
      %v1393 = vadd.f32 %v1292, %v1361
      %v1394 = vadd.f32 %v1293, %v1362
      %v1395 = vadd.f32 %v1294, %v1363
      %v1396 = vadd.f32 %v1295, %v1364
      %v1397 = vadd.f32 %v1296, %v1365
      %v1398 = vadd.f32 %v1297, %v1366
      %v1399 = vadd.f32 %v1298, %v1367
      %v1400 = vadd.f32 %v1299, %v1368
      %v1401 = vadd.f32 %v1300, %v1369
      %v1402 = vadd.f32 %v1301, %v1370
      %v1403 = vadd.f32 %v1302, %v1371
      %v1404 = vadd.f32 %v1303, %v1372
      %v1405 = vadd.f32 %v1304, %v1373
      %v1406 = vadd.f32 %v1305, %v1374
      %v1407 = vadd.f32 %v1306, %v1375
      %v1408 = vadd.f32 %v1307, %v1376
      %v1409 = vadd.f32 %v1308, %v1377
      %v1410 = vadd.f32 %v1309, %v1378
      %v1411 = vadd.f32 %v1310, %v1379
      %v1412 = vadd.f32 %v1311, %v1380
      %v1413 = vadd.f32 %v1312, %v1381
      %v1414 = vadd.f32 %v1313, %v1382
      %v1415 = vadd.f32 %v1314, %v1383
      %v1416 = vadd.f32 %v1315, %v1384
      %v1417 = vadd.f32 %v1316, %v1385
      %v1418 = vadd.f32 %v1317, %v1386
      %s1419 = scalar_lea.vmem [#allocation2], 24
      %v1420 = vld [vmem:[%s1419] sm:$0xff]
      %v1421 = vld [vmem:[%s1419 + $0x8] sm:$0xff]
      %v1422 = vld [vmem:[%s1419 + $0x18] sm:$0xff]
      %v1423 = vld [vmem:[%s1419 + $0x20] sm:$0xff]
      %v1424 = vld [vmem:[%s1419 + $0x30] sm:$0xff]
      %v1425 = vld [vmem:[%s1419 + $0x38] sm:$0xff]
      %v1426 = vld [vmem:[%s1419 + $0x48] sm:$0xff]
      %v1427 = vld [vmem:[%s1419 + $0x50] sm:$0xff]
      %v1428 = vld [vmem:[%s1419 + $0x60] sm:$0xff]
      %v1429 = vld [vmem:[%s1419 + $0x68] sm:$0xff]
      %v1430 = vld [vmem:[%s1419 + $0x78] sm:$0xff]
      %v1431 = vld [vmem:[%s1419 + $0x80] sm:$0xff]
      %v1432 = vld [vmem:[%s1419 + $0x90] sm:$0xff]
      %v1433 = vld [vmem:[%s1419 + $0x98] sm:$0xff]
      %v1434 = vld [vmem:[%s1419 + $0xa8] sm:$0xff]
      %v1435 = vld [vmem:[%s1419 + $0xb0] sm:$0xff]
      %v1436 = vld [vmem:[%s1419 + $0xc0] sm:$0xff]
      %v1437 = vld [vmem:[%s1419 + $0xc8] sm:$0xff]
      %v1438 = vld [vmem:[%s1419 + $0xd8] sm:$0xff]
      %v1439 = vld [vmem:[%s1419 + $0xe0] sm:$0xff]
      %v1440 = vld [vmem:[%s1419 + $0xf0] sm:$0xff]
      %v1441 = vld [vmem:[%s1419 + $0xf8] sm:$0xff]
      %v1442 = vld [vmem:[%s1419 + $0x108] sm:$0xff]
      %v1443 = vld [vmem:[%s1419 + $0x110] sm:$0xff]
      %v1444 = vld [vmem:[%s1419 + $0x120] sm:$0xff]
      %v1445 = vld [vmem:[%s1419 + $0x128] sm:$0xff]
      %v1446 = vld [vmem:[%s1419 + $0x138] sm:$0xff]
      %v1447 = vld [vmem:[%s1419 + $0x140] sm:$0xff]
      %v1448 = vld [vmem:[%s1419 + $0x150] sm:$0xff]
      %v1449 = vld [vmem:[%s1419 + $0x158] sm:$0xff]
      %v1450 = vld [vmem:[%s1419 + $0x168] sm:$0xff]
      %v1451 = vld [vmem:[%s1419 + $0x170] sm:$0xff]
      %s1452 = scalar_lea.vmem %s3, 4
      %v1453 = vld [vmem:[%s1452] sm:$0x1]
      %v1454 = vlaneseq
      %v1455 = vshrl.u32 %v1454, 7
      %v1456 = vsub.s32 0, %v1455
      %v1457 = vrot.slane %v1453, %v1456
      %v1458 = vmul.f32 %v1420, %v1457
      %v1459 = vmul.f32 %v1421, %v1457
      %v1460 = vmul.f32 %v1422, %v1457
      %v1461 = vmul.f32 %v1423, %v1457
      %v1462 = vmul.f32 %v1424, %v1457
      %v1463 = vmul.f32 %v1425, %v1457
      %v1464 = vmul.f32 %v1426, %v1457
      %v1465 = vmul.f32 %v1427, %v1457
      %v1466 = vmul.f32 %v1428, %v1457
      %v1467 = vmul.f32 %v1429, %v1457
      %v1468 = vmul.f32 %v1430, %v1457
      %v1469 = vmul.f32 %v1431, %v1457
      %v1470 = vmul.f32 %v1432, %v1457
      %v1471 = vmul.f32 %v1433, %v1457
      %v1472 = vmul.f32 %v1434, %v1457
      %v1473 = vmul.f32 %v1435, %v1457
      %v1474 = vmul.f32 %v1436, %v1457
      %v1475 = vmul.f32 %v1437, %v1457
      %v1476 = vmul.f32 %v1438, %v1457
      %v1477 = vmul.f32 %v1439, %v1457
      %v1478 = vmul.f32 %v1440, %v1457
      %v1479 = vmul.f32 %v1441, %v1457
      %v1480 = vmul.f32 %v1442, %v1457
      %v1481 = vmul.f32 %v1443, %v1457
      %v1482 = vmul.f32 %v1444, %v1457
      %v1483 = vmul.f32 %v1445, %v1457
      %v1484 = vmul.f32 %v1446, %v1457
      %v1485 = vmul.f32 %v1447, %v1457
      %v1486 = vmul.f32 %v1448, %v1457
      %v1487 = vmul.f32 %v1449, %v1457
      %v1488 = vmul.f32 %v1450, %v1457
      %v1489 = vmul.f32 %v1451, %v1457
      %v1490 = vadd.f32 %v1387, %v1458
      %v1491 = vadd.f32 %v1388, %v1459
      %v1492 = vadd.f32 %v1389, %v1460
      %v1493 = vadd.f32 %v1390, %v1461
      %v1494 = vadd.f32 %v1391, %v1462
      %v1495 = vadd.f32 %v1392, %v1463
      %v1496 = vadd.f32 %v1393, %v1464
      %v1497 = vadd.f32 %v1394, %v1465
      %v1498 = vadd.f32 %v1395, %v1466
      %v1499 = vadd.f32 %v1396, %v1467
      %v1500 = vadd.f32 %v1397, %v1468
      %v1501 = vadd.f32 %v1398, %v1469
      %v1502 = vadd.f32 %v1399, %v1470
      %v1503 = vadd.f32 %v1400, %v1471
      %v1504 = vadd.f32 %v1401, %v1472
      %v1505 = vadd.f32 %v1402, %v1473
      %v1506 = vadd.f32 %v1403, %v1474
      %v1507 = vadd.f32 %v1404, %v1475
      %v1508 = vadd.f32 %v1405, %v1476
      %v1509 = vadd.f32 %v1406, %v1477
      %v1510 = vadd.f32 %v1407, %v1478
      %v1511 = vadd.f32 %v1408, %v1479
      %v1512 = vadd.f32 %v1409, %v1480
      %v1513 = vadd.f32 %v1410, %v1481
      %v1514 = vadd.f32 %v1411, %v1482
      %v1515 = vadd.f32 %v1412, %v1483
      %v1516 = vadd.f32 %v1413, %v1484
      %v1517 = vadd.f32 %v1414, %v1485
      %v1518 = vadd.f32 %v1415, %v1486
      %v1519 = vadd.f32 %v1416, %v1487
      %v1520 = vadd.f32 %v1417, %v1488
      %v1521 = vadd.f32 %v1418, %v1489
      %v1522 = vld [vmem:[%s1419 + $0x1] sm:$0xff]
      %v1523 = vld [vmem:[%s1419 + $0x9] sm:$0xff]
      %v1524 = vld [vmem:[%s1419 + $0x19] sm:$0xff]
      %v1525 = vld [vmem:[%s1419 + $0x21] sm:$0xff]
      %v1526 = vld [vmem:[%s1419 + $0x31] sm:$0xff]
      %v1527 = vld [vmem:[%s1419 + $0x39] sm:$0xff]
      %v1528 = vld [vmem:[%s1419 + $0x49] sm:$0xff]
      %v1529 = vld [vmem:[%s1419 + $0x51] sm:$0xff]
      %v1530 = vld [vmem:[%s1419 + $0x61] sm:$0xff]
      %v1531 = vld [vmem:[%s1419 + $0x69] sm:$0xff]
      %v1532 = vld [vmem:[%s1419 + $0x79] sm:$0xff]
      %v1533 = vld [vmem:[%s1419 + $0x81] sm:$0xff]
      %v1534 = vld [vmem:[%s1419 + $0x91] sm:$0xff]
      %v1535 = vld [vmem:[%s1419 + $0x99] sm:$0xff]
      %v1536 = vld [vmem:[%s1419 + $0xa9] sm:$0xff]
      %v1537 = vld [vmem:[%s1419 + $0xb1] sm:$0xff]
      %v1538 = vld [vmem:[%s1419 + $0xc1] sm:$0xff]
      %v1539 = vld [vmem:[%s1419 + $0xc9] sm:$0xff]
      %v1540 = vld [vmem:[%s1419 + $0xd9] sm:$0xff]
      %v1541 = vld [vmem:[%s1419 + $0xe1] sm:$0xff]
      %v1542 = vld [vmem:[%s1419 + $0xf1] sm:$0xff]
      %v1543 = vld [vmem:[%s1419 + $0xf9] sm:$0xff]
      %v1544 = vld [vmem:[%s1419 + $0x109] sm:$0xff]
      %v1545 = vld [vmem:[%s1419 + $0x111] sm:$0xff]
      %v1546 = vld [vmem:[%s1419 + $0x121] sm:$0xff]
      %v1547 = vld [vmem:[%s1419 + $0x129] sm:$0xff]
      %v1548 = vld [vmem:[%s1419 + $0x139] sm:$0xff]
      %v1549 = vld [vmem:[%s1419 + $0x141] sm:$0xff]
      %v1550 = vld [vmem:[%s1419 + $0x151] sm:$0xff]
      %v1551 = vld [vmem:[%s1419 + $0x159] sm:$0xff]
      %v1552 = vld [vmem:[%s1419 + $0x169] sm:$0xff]
      %v1553 = vld [vmem:[%s1419 + $0x171] sm:$0xff]
      %v1554 = vld [vmem:[%s1452 + $0x1] sm:$0x1]
      %v1555 = vlaneseq
      %v1556 = vshrl.u32 %v1555, 7
      %v1557 = vsub.s32 0, %v1556
      %v1558 = vrot.slane %v1554, %v1557
      %v1559 = vmul.f32 %v1522, %v1558
      %v1560 = vmul.f32 %v1523, %v1558
      %v1561 = vmul.f32 %v1524, %v1558
      %v1562 = vmul.f32 %v1525, %v1558
      %v1563 = vmul.f32 %v1526, %v1558
      %v1564 = vmul.f32 %v1527, %v1558
      %v1565 = vmul.f32 %v1528, %v1558
      %v1566 = vmul.f32 %v1529, %v1558
      %v1567 = vmul.f32 %v1530, %v1558
      %v1568 = vmul.f32 %v1531, %v1558
      %v1569 = vmul.f32 %v1532, %v1558
      %v1570 = vmul.f32 %v1533, %v1558
      %v1571 = vmul.f32 %v1534, %v1558
      %v1572 = vmul.f32 %v1535, %v1558
      %v1573 = vmul.f32 %v1536, %v1558
      %v1574 = vmul.f32 %v1537, %v1558
      %v1575 = vmul.f32 %v1538, %v1558
      %v1576 = vmul.f32 %v1539, %v1558
      %v1577 = vmul.f32 %v1540, %v1558
      %v1578 = vmul.f32 %v1541, %v1558
      %v1579 = vmul.f32 %v1542, %v1558
      %v1580 = vmul.f32 %v1543, %v1558
      %v1581 = vmul.f32 %v1544, %v1558
      %v1582 = vmul.f32 %v1545, %v1558
      %v1583 = vmul.f32 %v1546, %v1558
      %v1584 = vmul.f32 %v1547, %v1558
      %v1585 = vmul.f32 %v1548, %v1558
      %v1586 = vmul.f32 %v1549, %v1558
      %v1587 = vmul.f32 %v1550, %v1558
      %v1588 = vmul.f32 %v1551, %v1558
      %v1589 = vmul.f32 %v1552, %v1558
      %v1590 = vmul.f32 %v1553, %v1558
      %v1591 = vadd.f32 %v1490, %v1559
      %v1592 = vadd.f32 %v1491, %v1560
      %v1593 = vadd.f32 %v1492, %v1561
      %v1594 = vadd.f32 %v1493, %v1562
      %v1595 = vadd.f32 %v1494, %v1563
      %v1596 = vadd.f32 %v1495, %v1564
      %v1597 = vadd.f32 %v1496, %v1565
      %v1598 = vadd.f32 %v1497, %v1566
      %v1599 = vadd.f32 %v1498, %v1567
      %v1600 = vadd.f32 %v1499, %v1568
      %v1601 = vadd.f32 %v1500, %v1569
      %v1602 = vadd.f32 %v1501, %v1570
      %v1603 = vadd.f32 %v1502, %v1571
      %v1604 = vadd.f32 %v1503, %v1572
      %v1605 = vadd.f32 %v1504, %v1573
      %v1606 = vadd.f32 %v1505, %v1574
      %v1607 = vadd.f32 %v1506, %v1575
      %v1608 = vadd.f32 %v1507, %v1576
      %v1609 = vadd.f32 %v1508, %v1577
      %v1610 = vadd.f32 %v1509, %v1578
      %v1611 = vadd.f32 %v1510, %v1579
      %v1612 = vadd.f32 %v1511, %v1580
      %v1613 = vadd.f32 %v1512, %v1581
      %v1614 = vadd.f32 %v1513, %v1582
      %v1615 = vadd.f32 %v1514, %v1583
      %v1616 = vadd.f32 %v1515, %v1584
      %v1617 = vadd.f32 %v1516, %v1585
      %v1618 = vadd.f32 %v1517, %v1586
      %v1619 = vadd.f32 %v1518, %v1587
      %v1620 = vadd.f32 %v1519, %v1588
      %v1621 = vadd.f32 %v1520, %v1589
      %v1622 = vadd.f32 %v1521, %v1590
      %v1623 = vld [vmem:[%s1419 + $0x2] sm:$0xff]
      %v1624 = vld [vmem:[%s1419 + $0xa] sm:$0xff]
      %v1625 = vld [vmem:[%s1419 + $0x1a] sm:$0xff]
      %v1626 = vld [vmem:[%s1419 + $0x22] sm:$0xff]
      %v1627 = vld [vmem:[%s1419 + $0x32] sm:$0xff]
      %v1628 = vld [vmem:[%s1419 + $0x3a] sm:$0xff]
      %v1629 = vld [vmem:[%s1419 + $0x4a] sm:$0xff]
      %v1630 = vld [vmem:[%s1419 + $0x52] sm:$0xff]
      %v1631 = vld [vmem:[%s1419 + $0x62] sm:$0xff]
      %v1632 = vld [vmem:[%s1419 + $0x6a] sm:$0xff]
      %v1633 = vld [vmem:[%s1419 + $0x7a] sm:$0xff]
      %v1634 = vld [vmem:[%s1419 + $0x82] sm:$0xff]
      %v1635 = vld [vmem:[%s1419 + $0x92] sm:$0xff]
      %v1636 = vld [vmem:[%s1419 + $0x9a] sm:$0xff]
      %v1637 = vld [vmem:[%s1419 + $0xaa] sm:$0xff]
      %v1638 = vld [vmem:[%s1419 + $0xb2] sm:$0xff]
      %v1639 = vld [vmem:[%s1419 + $0xc2] sm:$0xff]
      %v1640 = vld [vmem:[%s1419 + $0xca] sm:$0xff]
      %v1641 = vld [vmem:[%s1419 + $0xda] sm:$0xff]
      %v1642 = vld [vmem:[%s1419 + $0xe2] sm:$0xff]
      %v1643 = vld [vmem:[%s1419 + $0xf2] sm:$0xff]
      %v1644 = vld [vmem:[%s1419 + $0xfa] sm:$0xff]
      %v1645 = vld [vmem:[%s1419 + $0x10a] sm:$0xff]
      %v1646 = vld [vmem:[%s1419 + $0x112] sm:$0xff]
      %v1647 = vld [vmem:[%s1419 + $0x122] sm:$0xff]
      %v1648 = vld [vmem:[%s1419 + $0x12a] sm:$0xff]
      %v1649 = vld [vmem:[%s1419 + $0x13a] sm:$0xff]
      %v1650 = vld [vmem:[%s1419 + $0x142] sm:$0xff]
      %v1651 = vld [vmem:[%s1419 + $0x152] sm:$0xff]
      %v1652 = vld [vmem:[%s1419 + $0x15a] sm:$0xff]
      %v1653 = vld [vmem:[%s1419 + $0x16a] sm:$0xff]
      %v1654 = vld [vmem:[%s1419 + $0x172] sm:$0xff]
      %v1655 = vld [vmem:[%s1452 + $0x2] sm:$0x1]
      %v1656 = vlaneseq
      %v1657 = vshrl.u32 %v1656, 7
      %v1658 = vsub.s32 0, %v1657
      %v1659 = vrot.slane %v1655, %v1658
      %v1660 = vmul.f32 %v1623, %v1659
      %v1661 = vmul.f32 %v1624, %v1659
      %v1662 = vmul.f32 %v1625, %v1659
      %v1663 = vmul.f32 %v1626, %v1659
      %v1664 = vmul.f32 %v1627, %v1659
      %v1665 = vmul.f32 %v1628, %v1659
      %v1666 = vmul.f32 %v1629, %v1659
      %v1667 = vmul.f32 %v1630, %v1659
      %v1668 = vmul.f32 %v1631, %v1659
      %v1669 = vmul.f32 %v1632, %v1659
      %v1670 = vmul.f32 %v1633, %v1659
      %v1671 = vmul.f32 %v1634, %v1659
      %v1672 = vmul.f32 %v1635, %v1659
      %v1673 = vmul.f32 %v1636, %v1659
      %v1674 = vmul.f32 %v1637, %v1659
      %v1675 = vmul.f32 %v1638, %v1659
      %v1676 = vmul.f32 %v1639, %v1659
      %v1677 = vmul.f32 %v1640, %v1659
      %v1678 = vmul.f32 %v1641, %v1659
      %v1679 = vmul.f32 %v1642, %v1659
      %v1680 = vmul.f32 %v1643, %v1659
      %v1681 = vmul.f32 %v1644, %v1659
      %v1682 = vmul.f32 %v1645, %v1659
      %v1683 = vmul.f32 %v1646, %v1659
      %v1684 = vmul.f32 %v1647, %v1659
      %v1685 = vmul.f32 %v1648, %v1659
      %v1686 = vmul.f32 %v1649, %v1659
      %v1687 = vmul.f32 %v1650, %v1659
      %v1688 = vmul.f32 %v1651, %v1659
      %v1689 = vmul.f32 %v1652, %v1659
      %v1690 = vmul.f32 %v1653, %v1659
      %v1691 = vmul.f32 %v1654, %v1659
      %v1692 = vadd.f32 %v1591, %v1660
      %v1693 = vadd.f32 %v1592, %v1661
      %v1694 = vadd.f32 %v1593, %v1662
      %v1695 = vadd.f32 %v1594, %v1663
      %v1696 = vadd.f32 %v1595, %v1664
      %v1697 = vadd.f32 %v1596, %v1665
      %v1698 = vadd.f32 %v1597, %v1666
      %v1699 = vadd.f32 %v1598, %v1667
      %v1700 = vadd.f32 %v1599, %v1668
      %v1701 = vadd.f32 %v1600, %v1669
      %v1702 = vadd.f32 %v1601, %v1670
      %v1703 = vadd.f32 %v1602, %v1671
      %v1704 = vadd.f32 %v1603, %v1672
      %v1705 = vadd.f32 %v1604, %v1673
      %v1706 = vadd.f32 %v1605, %v1674
      %v1707 = vadd.f32 %v1606, %v1675
      %v1708 = vadd.f32 %v1607, %v1676
      %v1709 = vadd.f32 %v1608, %v1677
      %v1710 = vadd.f32 %v1609, %v1678
      %v1711 = vadd.f32 %v1610, %v1679
      %v1712 = vadd.f32 %v1611, %v1680
      %v1713 = vadd.f32 %v1612, %v1681
      %v1714 = vadd.f32 %v1613, %v1682
      %v1715 = vadd.f32 %v1614, %v1683
      %v1716 = vadd.f32 %v1615, %v1684
      %v1717 = vadd.f32 %v1616, %v1685
      %v1718 = vadd.f32 %v1617, %v1686
      %v1719 = vadd.f32 %v1618, %v1687
      %v1720 = vadd.f32 %v1619, %v1688
      %v1721 = vadd.f32 %v1620, %v1689
      %v1722 = vadd.f32 %v1621, %v1690
      %v1723 = vadd.f32 %v1622, %v1691
      %s1724 = scalar_lea.vmem [#allocation2], 48
      %v1725 = vld [vmem:[%s1724] sm:$0xff]
      %v1726 = vld [vmem:[%s1724 + $0x8] sm:$0xff]
      %v1727 = vld [vmem:[%s1724 + $0x18] sm:$0xff]
      %v1728 = vld [vmem:[%s1724 + $0x20] sm:$0xff]
      %v1729 = vld [vmem:[%s1724 + $0x30] sm:$0xff]
      %v1730 = vld [vmem:[%s1724 + $0x38] sm:$0xff]
      %v1731 = vld [vmem:[%s1724 + $0x48] sm:$0xff]
      %v1732 = vld [vmem:[%s1724 + $0x50] sm:$0xff]
      %v1733 = vld [vmem:[%s1724 + $0x60] sm:$0xff]
      %v1734 = vld [vmem:[%s1724 + $0x68] sm:$0xff]
      %v1735 = vld [vmem:[%s1724 + $0x78] sm:$0xff]
      %v1736 = vld [vmem:[%s1724 + $0x80] sm:$0xff]
      %v1737 = vld [vmem:[%s1724 + $0x90] sm:$0xff]
      %v1738 = vld [vmem:[%s1724 + $0x98] sm:$0xff]
      %v1739 = vld [vmem:[%s1724 + $0xa8] sm:$0xff]
      %v1740 = vld [vmem:[%s1724 + $0xb0] sm:$0xff]
      %v1741 = vld [vmem:[%s1724 + $0xc0] sm:$0xff]
      %v1742 = vld [vmem:[%s1724 + $0xc8] sm:$0xff]
      %v1743 = vld [vmem:[%s1724 + $0xd8] sm:$0xff]
      %v1744 = vld [vmem:[%s1724 + $0xe0] sm:$0xff]
      %v1745 = vld [vmem:[%s1724 + $0xf0] sm:$0xff]
      %v1746 = vld [vmem:[%s1724 + $0xf8] sm:$0xff]
      %v1747 = vld [vmem:[%s1724 + $0x108] sm:$0xff]
      %v1748 = vld [vmem:[%s1724 + $0x110] sm:$0xff]
      %v1749 = vld [vmem:[%s1724 + $0x120] sm:$0xff]
      %v1750 = vld [vmem:[%s1724 + $0x128] sm:$0xff]
      %v1751 = vld [vmem:[%s1724 + $0x138] sm:$0xff]
      %v1752 = vld [vmem:[%s1724 + $0x140] sm:$0xff]
      %v1753 = vld [vmem:[%s1724 + $0x150] sm:$0xff]
      %v1754 = vld [vmem:[%s1724 + $0x158] sm:$0xff]
      %v1755 = vld [vmem:[%s1724 + $0x168] sm:$0xff]
      %v1756 = vld [vmem:[%s1724 + $0x170] sm:$0xff]
      %s1757 = scalar_lea.vmem %s3, 8
      %v1758 = vld [vmem:[%s1757] sm:$0x1]
      %v1759 = vlaneseq
      %v1760 = vshrl.u32 %v1759, 7
      %v1761 = vsub.s32 0, %v1760
      %v1762 = vrot.slane %v1758, %v1761
      %v1763 = vmul.f32 %v1725, %v1762
      %v1764 = vmul.f32 %v1726, %v1762
      %v1765 = vmul.f32 %v1727, %v1762
      %v1766 = vmul.f32 %v1728, %v1762
      %v1767 = vmul.f32 %v1729, %v1762
      %v1768 = vmul.f32 %v1730, %v1762
      %v1769 = vmul.f32 %v1731, %v1762
      %v1770 = vmul.f32 %v1732, %v1762
      %v1771 = vmul.f32 %v1733, %v1762
      %v1772 = vmul.f32 %v1734, %v1762
      %v1773 = vmul.f32 %v1735, %v1762
      %v1774 = vmul.f32 %v1736, %v1762
      %v1775 = vmul.f32 %v1737, %v1762
      %v1776 = vmul.f32 %v1738, %v1762
      %v1777 = vmul.f32 %v1739, %v1762
      %v1778 = vmul.f32 %v1740, %v1762
      %v1779 = vmul.f32 %v1741, %v1762
      %v1780 = vmul.f32 %v1742, %v1762
      %v1781 = vmul.f32 %v1743, %v1762
      %v1782 = vmul.f32 %v1744, %v1762
      %v1783 = vmul.f32 %v1745, %v1762
      %v1784 = vmul.f32 %v1746, %v1762
      %v1785 = vmul.f32 %v1747, %v1762
      %v1786 = vmul.f32 %v1748, %v1762
      %v1787 = vmul.f32 %v1749, %v1762
      %v1788 = vmul.f32 %v1750, %v1762
      %v1789 = vmul.f32 %v1751, %v1762
      %v1790 = vmul.f32 %v1752, %v1762
      %v1791 = vmul.f32 %v1753, %v1762
      %v1792 = vmul.f32 %v1754, %v1762
      %v1793 = vmul.f32 %v1755, %v1762
      %v1794 = vmul.f32 %v1756, %v1762
      %v1795 = vadd.f32 %v1692, %v1763
      %v1796 = vadd.f32 %v1693, %v1764
      %v1797 = vadd.f32 %v1694, %v1765
      %v1798 = vadd.f32 %v1695, %v1766
      %v1799 = vadd.f32 %v1696, %v1767
      %v1800 = vadd.f32 %v1697, %v1768
      %v1801 = vadd.f32 %v1698, %v1769
      %v1802 = vadd.f32 %v1699, %v1770
      %v1803 = vadd.f32 %v1700, %v1771
      %v1804 = vadd.f32 %v1701, %v1772
      %v1805 = vadd.f32 %v1702, %v1773
      %v1806 = vadd.f32 %v1703, %v1774
      %v1807 = vadd.f32 %v1704, %v1775
      %v1808 = vadd.f32 %v1705, %v1776
      %v1809 = vadd.f32 %v1706, %v1777
      %v1810 = vadd.f32 %v1707, %v1778
      %v1811 = vadd.f32 %v1708, %v1779
      %v1812 = vadd.f32 %v1709, %v1780
      %v1813 = vadd.f32 %v1710, %v1781
      %v1814 = vadd.f32 %v1711, %v1782
      %v1815 = vadd.f32 %v1712, %v1783
      %v1816 = vadd.f32 %v1713, %v1784
      %v1817 = vadd.f32 %v1714, %v1785
      %v1818 = vadd.f32 %v1715, %v1786
      %v1819 = vadd.f32 %v1716, %v1787
      %v1820 = vadd.f32 %v1717, %v1788
      %v1821 = vadd.f32 %v1718, %v1789
      %v1822 = vadd.f32 %v1719, %v1790
      %v1823 = vadd.f32 %v1720, %v1791
      %v1824 = vadd.f32 %v1721, %v1792
      %v1825 = vadd.f32 %v1722, %v1793
      %v1826 = vadd.f32 %v1723, %v1794
      %v1827 = vld [vmem:[%s1724 + $0x1] sm:$0xff]
      %v1828 = vld [vmem:[%s1724 + $0x9] sm:$0xff]
      %v1829 = vld [vmem:[%s1724 + $0x19] sm:$0xff]
      %v1830 = vld [vmem:[%s1724 + $0x21] sm:$0xff]
      %v1831 = vld [vmem:[%s1724 + $0x31] sm:$0xff]
      %v1832 = vld [vmem:[%s1724 + $0x39] sm:$0xff]
      %v1833 = vld [vmem:[%s1724 + $0x49] sm:$0xff]
      %v1834 = vld [vmem:[%s1724 + $0x51] sm:$0xff]
      %v1835 = vld [vmem:[%s1724 + $0x61] sm:$0xff]
      %v1836 = vld [vmem:[%s1724 + $0x69] sm:$0xff]
      %v1837 = vld [vmem:[%s1724 + $0x79] sm:$0xff]
      %v1838 = vld [vmem:[%s1724 + $0x81] sm:$0xff]
      %v1839 = vld [vmem:[%s1724 + $0x91] sm:$0xff]
      %v1840 = vld [vmem:[%s1724 + $0x99] sm:$0xff]
      %v1841 = vld [vmem:[%s1724 + $0xa9] sm:$0xff]
      %v1842 = vld [vmem:[%s1724 + $0xb1] sm:$0xff]
      %v1843 = vld [vmem:[%s1724 + $0xc1] sm:$0xff]
      %v1844 = vld [vmem:[%s1724 + $0xc9] sm:$0xff]
      %v1845 = vld [vmem:[%s1724 + $0xd9] sm:$0xff]
      %v1846 = vld [vmem:[%s1724 + $0xe1] sm:$0xff]
      %v1847 = vld [vmem:[%s1724 + $0xf1] sm:$0xff]
      %v1848 = vld [vmem:[%s1724 + $0xf9] sm:$0xff]
      %v1849 = vld [vmem:[%s1724 + $0x109] sm:$0xff]
      %v1850 = vld [vmem:[%s1724 + $0x111] sm:$0xff]
      %v1851 = vld [vmem:[%s1724 + $0x121] sm:$0xff]
      %v1852 = vld [vmem:[%s1724 + $0x129] sm:$0xff]
      %v1853 = vld [vmem:[%s1724 + $0x139] sm:$0xff]
      %v1854 = vld [vmem:[%s1724 + $0x141] sm:$0xff]
      %v1855 = vld [vmem:[%s1724 + $0x151] sm:$0xff]
      %v1856 = vld [vmem:[%s1724 + $0x159] sm:$0xff]
      %v1857 = vld [vmem:[%s1724 + $0x169] sm:$0xff]
      %v1858 = vld [vmem:[%s1724 + $0x171] sm:$0xff]
      %v1859 = vld [vmem:[%s1757 + $0x1] sm:$0x1]
      %v1860 = vlaneseq
      %v1861 = vshrl.u32 %v1860, 7
      %v1862 = vsub.s32 0, %v1861
      %v1863 = vrot.slane %v1859, %v1862
      %v1864 = vmul.f32 %v1827, %v1863
      %v1865 = vmul.f32 %v1828, %v1863
      %v1866 = vmul.f32 %v1829, %v1863
      %v1867 = vmul.f32 %v1830, %v1863
      %v1868 = vmul.f32 %v1831, %v1863
      %v1869 = vmul.f32 %v1832, %v1863
      %v1870 = vmul.f32 %v1833, %v1863
      %v1871 = vmul.f32 %v1834, %v1863
      %v1872 = vmul.f32 %v1835, %v1863
      %v1873 = vmul.f32 %v1836, %v1863
      %v1874 = vmul.f32 %v1837, %v1863
      %v1875 = vmul.f32 %v1838, %v1863
      %v1876 = vmul.f32 %v1839, %v1863
      %v1877 = vmul.f32 %v1840, %v1863
      %v1878 = vmul.f32 %v1841, %v1863
      %v1879 = vmul.f32 %v1842, %v1863
      %v1880 = vmul.f32 %v1843, %v1863
      %v1881 = vmul.f32 %v1844, %v1863
      %v1882 = vmul.f32 %v1845, %v1863
      %v1883 = vmul.f32 %v1846, %v1863
      %v1884 = vmul.f32 %v1847, %v1863
      %v1885 = vmul.f32 %v1848, %v1863
      %v1886 = vmul.f32 %v1849, %v1863
      %v1887 = vmul.f32 %v1850, %v1863
      %v1888 = vmul.f32 %v1851, %v1863
      %v1889 = vmul.f32 %v1852, %v1863
      %v1890 = vmul.f32 %v1853, %v1863
      %v1891 = vmul.f32 %v1854, %v1863
      %v1892 = vmul.f32 %v1855, %v1863
      %v1893 = vmul.f32 %v1856, %v1863
      %v1894 = vmul.f32 %v1857, %v1863
      %v1895 = vmul.f32 %v1858, %v1863
      %v1896 = vadd.f32 %v1795, %v1864
      %v1897 = vadd.f32 %v1796, %v1865
      %v1898 = vadd.f32 %v1797, %v1866
      %v1899 = vadd.f32 %v1798, %v1867
      %v1900 = vadd.f32 %v1799, %v1868
      %v1901 = vadd.f32 %v1800, %v1869
      %v1902 = vadd.f32 %v1801, %v1870
      %v1903 = vadd.f32 %v1802, %v1871
      %v1904 = vadd.f32 %v1803, %v1872
      %v1905 = vadd.f32 %v1804, %v1873
      %v1906 = vadd.f32 %v1805, %v1874
      %v1907 = vadd.f32 %v1806, %v1875
      %v1908 = vadd.f32 %v1807, %v1876
      %v1909 = vadd.f32 %v1808, %v1877
      %v1910 = vadd.f32 %v1809, %v1878
      %v1911 = vadd.f32 %v1810, %v1879
      %v1912 = vadd.f32 %v1811, %v1880
      %v1913 = vadd.f32 %v1812, %v1881
      %v1914 = vadd.f32 %v1813, %v1882
      %v1915 = vadd.f32 %v1814, %v1883
      %v1916 = vadd.f32 %v1815, %v1884
      %v1917 = vadd.f32 %v1816, %v1885
      %v1918 = vadd.f32 %v1817, %v1886
      %v1919 = vadd.f32 %v1818, %v1887
      %v1920 = vadd.f32 %v1819, %v1888
      %v1921 = vadd.f32 %v1820, %v1889
      %v1922 = vadd.f32 %v1821, %v1890
      %v1923 = vadd.f32 %v1822, %v1891
      %v1924 = vadd.f32 %v1823, %v1892
      %v1925 = vadd.f32 %v1824, %v1893
      %v1926 = vadd.f32 %v1825, %v1894
      %v1927 = vadd.f32 %v1826, %v1895
      %v1928 = vld [vmem:[%s1724 + $0x2] sm:$0xff]
      %v1929 = vld [vmem:[%s1724 + $0xa] sm:$0xff]
      %v1930 = vld [vmem:[%s1724 + $0x1a] sm:$0xff]
      %v1931 = vld [vmem:[%s1724 + $0x22] sm:$0xff]
      %v1932 = vld [vmem:[%s1724 + $0x32] sm:$0xff]
      %v1933 = vld [vmem:[%s1724 + $0x3a] sm:$0xff]
      %v1934 = vld [vmem:[%s1724 + $0x4a] sm:$0xff]
      %v1935 = vld [vmem:[%s1724 + $0x52] sm:$0xff]
      %v1936 = vld [vmem:[%s1724 + $0x62] sm:$0xff]
      %v1937 = vld [vmem:[%s1724 + $0x6a] sm:$0xff]
      %v1938 = vld [vmem:[%s1724 + $0x7a] sm:$0xff]
      %v1939 = vld [vmem:[%s1724 + $0x82] sm:$0xff]
      %v1940 = vld [vmem:[%s1724 + $0x92] sm:$0xff]
      %v1941 = vld [vmem:[%s1724 + $0x9a] sm:$0xff]
      %v1942 = vld [vmem:[%s1724 + $0xaa] sm:$0xff]
      %v1943 = vld [vmem:[%s1724 + $0xb2] sm:$0xff]
      %v1944 = vld [vmem:[%s1724 + $0xc2] sm:$0xff]
      %v1945 = vld [vmem:[%s1724 + $0xca] sm:$0xff]
      %v1946 = vld [vmem:[%s1724 + $0xda] sm:$0xff]
      %v1947 = vld [vmem:[%s1724 + $0xe2] sm:$0xff]
      %v1948 = vld [vmem:[%s1724 + $0xf2] sm:$0xff]
      %v1949 = vld [vmem:[%s1724 + $0xfa] sm:$0xff]
      %v1950 = vld [vmem:[%s1724 + $0x10a] sm:$0xff]
      %v1951 = vld [vmem:[%s1724 + $0x112] sm:$0xff]
      %v1952 = vld [vmem:[%s1724 + $0x122] sm:$0xff]
      %v1953 = vld [vmem:[%s1724 + $0x12a] sm:$0xff]
      %v1954 = vld [vmem:[%s1724 + $0x13a] sm:$0xff]
      %v1955 = vld [vmem:[%s1724 + $0x142] sm:$0xff]
      %v1956 = vld [vmem:[%s1724 + $0x152] sm:$0xff]
      %v1957 = vld [vmem:[%s1724 + $0x15a] sm:$0xff]
      %v1958 = vld [vmem:[%s1724 + $0x16a] sm:$0xff]
      %v1959 = vld [vmem:[%s1724 + $0x172] sm:$0xff]
      %v1960 = vld [vmem:[%s1757 + $0x2] sm:$0x1]
      %v1961 = vlaneseq
      %v1962 = vshrl.u32 %v1961, 7
      %v1963 = vsub.s32 0, %v1962
      %v1964 = vrot.slane %v1960, %v1963
      %v1965 = vmul.f32 %v1928, %v1964
      %v1966 = vmul.f32 %v1929, %v1964
      %v1967 = vmul.f32 %v1930, %v1964
      %v1968 = vmul.f32 %v1931, %v1964
      %v1969 = vmul.f32 %v1932, %v1964
      %v1970 = vmul.f32 %v1933, %v1964
      %v1971 = vmul.f32 %v1934, %v1964
      %v1972 = vmul.f32 %v1935, %v1964
      %v1973 = vmul.f32 %v1936, %v1964
      %v1974 = vmul.f32 %v1937, %v1964
      %v1975 = vmul.f32 %v1938, %v1964
      %v1976 = vmul.f32 %v1939, %v1964
      %v1977 = vmul.f32 %v1940, %v1964
      %v1978 = vmul.f32 %v1941, %v1964
      %v1979 = vmul.f32 %v1942, %v1964
      %v1980 = vmul.f32 %v1943, %v1964
      %v1981 = vmul.f32 %v1944, %v1964
      %v1982 = vmul.f32 %v1945, %v1964
      %v1983 = vmul.f32 %v1946, %v1964
      %v1984 = vmul.f32 %v1947, %v1964
      %v1985 = vmul.f32 %v1948, %v1964
      %v1986 = vmul.f32 %v1949, %v1964
      %v1987 = vmul.f32 %v1950, %v1964
      %v1988 = vmul.f32 %v1951, %v1964
      %v1989 = vmul.f32 %v1952, %v1964
      %v1990 = vmul.f32 %v1953, %v1964
      %v1991 = vmul.f32 %v1954, %v1964
      %v1992 = vmul.f32 %v1955, %v1964
      %v1993 = vmul.f32 %v1956, %v1964
      %v1994 = vmul.f32 %v1957, %v1964
      %v1995 = vmul.f32 %v1958, %v1964
      %v1996 = vmul.f32 %v1959, %v1964
      %v1997 = vadd.f32 %v1896, %v1965
      %v1998 = vadd.f32 %v1897, %v1966
      %v1999 = vadd.f32 %v1898, %v1967
      %v2000 = vadd.f32 %v1899, %v1968
      %v2001 = vadd.f32 %v1900, %v1969
      %v2002 = vadd.f32 %v1901, %v1970
      %v2003 = vadd.f32 %v1902, %v1971
      %v2004 = vadd.f32 %v1903, %v1972
      %v2005 = vadd.f32 %v1904, %v1973
      %v2006 = vadd.f32 %v1905, %v1974
      %v2007 = vadd.f32 %v1906, %v1975
      %v2008 = vadd.f32 %v1907, %v1976
      %v2009 = vadd.f32 %v1908, %v1977
      %v2010 = vadd.f32 %v1909, %v1978
      %v2011 = vadd.f32 %v1910, %v1979
      %v2012 = vadd.f32 %v1911, %v1980
      %v2013 = vadd.f32 %v1912, %v1981
      %v2014 = vadd.f32 %v1913, %v1982
      %v2015 = vadd.f32 %v1914, %v1983
      %v2016 = vadd.f32 %v1915, %v1984
      %v2017 = vadd.f32 %v1916, %v1985
      %v2018 = vadd.f32 %v1917, %v1986
      %v2019 = vadd.f32 %v1918, %v1987
      %v2020 = vadd.f32 %v1919, %v1988
      %v2021 = vadd.f32 %v1920, %v1989
      %v2022 = vadd.f32 %v1921, %v1990
      %v2023 = vadd.f32 %v1922, %v1991
      %v2024 = vadd.f32 %v1923, %v1992
      %v2025 = vadd.f32 %v1924, %v1993
      %v2026 = vadd.f32 %v1925, %v1994
      %v2027 = vadd.f32 %v1926, %v1995
      %v2028 = vadd.f32 %v1927, %v1996
      %v2029 = vld [vmem:[%s4] sm:$0x1]
      %v2031 = vlaneseq
      %v2032 = vshrl.u32 %v2031, 7
      %v2033 = vsub.s32 0, %v2032
      %v2034 = vrot.slane %v2029, %v2033
      %v2036 = vadd.f32 %v1997, %v2034
      %v2037 = vadd.f32 %v1998, %v2034
      %v2038 = vadd.f32 %v1999, %v2034
      %v2039 = vadd.f32 %v2000, %v2034
      %v2040 = vadd.f32 %v2001, %v2034
      %v2041 = vadd.f32 %v2002, %v2034
      %v2042 = vadd.f32 %v2003, %v2034
      %v2043 = vadd.f32 %v2004, %v2034
      %v2044 = vadd.f32 %v2005, %v2034
      %v2045 = vadd.f32 %v2006, %v2034
      %v2046 = vadd.f32 %v2007, %v2034
      %v2047 = vadd.f32 %v2008, %v2034
      %v2048 = vadd.f32 %v2009, %v2034
      %v2049 = vadd.f32 %v2010, %v2034
      %v2050 = vadd.f32 %v2011, %v2034
      %v2051 = vadd.f32 %v2012, %v2034
      %v2052 = vadd.f32 %v2013, %v2034
      %v2053 = vadd.f32 %v2014, %v2034
      %v2054 = vadd.f32 %v2015, %v2034
      %v2055 = vadd.f32 %v2016, %v2034
      %v2056 = vadd.f32 %v2017, %v2034
      %v2057 = vadd.f32 %v2018, %v2034
      %v2058 = vadd.f32 %v2019, %v2034
      %v2059 = vadd.f32 %v2020, %v2034
      %v2060 = vadd.f32 %v2021, %v2034
      %v2061 = vadd.f32 %v2022, %v2034
      %v2062 = vadd.f32 %v2023, %v2034
      %v2063 = vadd.f32 %v2024, %v2034
      %v2064 = vadd.f32 %v2025, %v2034
      %v2065 = vadd.f32 %v2026, %v2034
      %v2066 = vadd.f32 %v2027, %v2034
      %v2067 = vadd.f32 %v2028, %v2034
      %v2068 = vmax.f32 %v2036, 0.0
      %v2069 = vmax.f32 %v2037, 0.0
      %v2070 = vmax.f32 %v2038, 0.0
      %v2071 = vmax.f32 %v2039, 0.0
      %v2072 = vmax.f32 %v2040, 0.0
      %v2073 = vmax.f32 %v2041, 0.0
      %v2074 = vmax.f32 %v2042, 0.0
      %v2075 = vmax.f32 %v2043, 0.0
      %v2076 = vmax.f32 %v2044, 0.0
      %v2077 = vmax.f32 %v2045, 0.0
      %v2078 = vmax.f32 %v2046, 0.0
      %v2079 = vmax.f32 %v2047, 0.0
      %v2080 = vmax.f32 %v2048, 0.0
      %v2081 = vmax.f32 %v2049, 0.0
      %v2082 = vmax.f32 %v2050, 0.0
      %v2083 = vmax.f32 %v2051, 0.0
      %v2084 = vmax.f32 %v2052, 0.0
      %v2085 = vmax.f32 %v2053, 0.0
      %v2086 = vmax.f32 %v2054, 0.0
      %v2087 = vmax.f32 %v2055, 0.0
      %v2088 = vmax.f32 %v2056, 0.0
      %v2089 = vmax.f32 %v2057, 0.0
      %v2090 = vmax.f32 %v2058, 0.0
      %v2091 = vmax.f32 %v2059, 0.0
      %v2092 = vmax.f32 %v2060, 0.0
      %v2093 = vmax.f32 %v2061, 0.0
      %v2094 = vmax.f32 %v2062, 0.0
      %v2095 = vmax.f32 %v2063, 0.0
      %v2096 = vmax.f32 %v2064, 0.0
      %v2097 = vmax.f32 %v2065, 0.0
      %v2098 = vmax.f32 %v2066, 0.0
      %v2099 = vmax.f32 %v2067, 0.0
      %v2100 = vmin.f32 %v2068, 6.0
      %v2101 = vmin.f32 %v2069, 6.0
      %v2102 = vmin.f32 %v2070, 6.0
      %v2103 = vmin.f32 %v2071, 6.0
      %v2104 = vmin.f32 %v2072, 6.0
      %v2105 = vmin.f32 %v2073, 6.0
      %v2106 = vmin.f32 %v2074, 6.0
      %v2107 = vmin.f32 %v2075, 6.0
      %v2108 = vmin.f32 %v2076, 6.0
      %v2109 = vmin.f32 %v2077, 6.0
      %v2110 = vmin.f32 %v2078, 6.0
      %v2111 = vmin.f32 %v2079, 6.0
      %v2112 = vmin.f32 %v2080, 6.0
      %v2113 = vmin.f32 %v2081, 6.0
      %v2114 = vmin.f32 %v2082, 6.0
      %v2115 = vmin.f32 %v2083, 6.0
      %v2116 = vmin.f32 %v2084, 6.0
      %v2117 = vmin.f32 %v2085, 6.0
      %v2118 = vmin.f32 %v2086, 6.0
      %v2119 = vmin.f32 %v2087, 6.0
      %v2120 = vmin.f32 %v2088, 6.0
      %v2121 = vmin.f32 %v2089, 6.0
      %v2122 = vmin.f32 %v2090, 6.0
      %v2123 = vmin.f32 %v2091, 6.0
      %v2124 = vmin.f32 %v2092, 6.0
      %v2125 = vmin.f32 %v2093, 6.0
      %v2126 = vmin.f32 %v2094, 6.0
      %v2127 = vmin.f32 %v2095, 6.0
      %v2128 = vmin.f32 %v2096, 6.0
      %v2129 = vmin.f32 %v2097, 6.0
      %v2130 = vmin.f32 %v2098, 6.0
      %v2131 = vmin.f32 %v2099, 6.0
      %v2132 = vld [vmem:[%s5] sm:$0xff]
      %v2133 = vld [vmem:[%s5 + $0x8] sm:$0xff]
      %v2134 = vld [vmem:[%s5 + $0x10] sm:$0xff]
      %v2135 = vld [vmem:[%s5 + $0x18] sm:$0xff]
      %v2136 = vld [vmem:[%s6] sm:$0x1]
      %v2138 = vlaneseq
      %v2139 = vshrl.u32 %v2138, 7
      %v2140 = vsub.s32 0, %v2139
      %v2141 = vrot.slane %v2136, %v2140
      %v2144 = vsel %vm1045, %v2100, 0
      %v2147 = vsel %vm1045, %v2101, 0
      %v2150 = vsel %vm1045, %v2102, 0
      %v2153 = vsel %vm1045, %v2103, 0
      %v2156 = vsel %vm1045, %v2104, 0
      %v2159 = vsel %vm1045, %v2105, 0
      %v2162 = vsel %vm1045, %v2106, 0
      %v2165 = vsel %vm1045, %v2107, 0
      %v2168 = vsel %vm1045, %v2108, 0
      %v2171 = vsel %vm1045, %v2109, 0
      %v2174 = vsel %vm1045, %v2110, 0
      %v2177 = vsel %vm1045, %v2111, 0
      %v2180 = vsel %vm1045, %v2112, 0
      %v2183 = vsel %vm1045, %v2113, 0
      %v2186 = vsel %vm1045, %v2114, 0
      %v2189 = vsel %vm1045, %v2115, 0
      %v2192 = vsel %vm1045, %v2116, 0
      %v2195 = vsel %vm1045, %v2117, 0
      %v2198 = vsel %vm1045, %v2118, 0
      %v2201 = vsel %vm1045, %v2119, 0
      %v2204 = vsel %vm1045, %v2120, 0
      %v2207 = vsel %vm1045, %v2121, 0
      %v2210 = vsel %vm1045, %v2122, 0
      %v2213 = vsel %vm1045, %v2123, 0
      %v2216 = vsel %vm1045, %v2124, 0
      %v2219 = vsel %vm1045, %v2125, 0
      %v2222 = vsel %vm1045, %v2126, 0
      %v2225 = vsel %vm1045, %v2127, 0
      %v2228 = vsel %vm1045, %v2128, 0
      %v2231 = vsel %vm1045, %v2129, 0
      %v2234 = vsel %vm1045, %v2130, 0
      %v2237 = vsel %vm1045, %v2131, 0
      %2239 = vmatprep.subr.mxu0 0.0
      %2240 = vmatpush1.msra.mxu0 %v2132
      %2241 = vmatprep.subr.mxu0 0.0
      %2242 = vmatpush1.msra.mxu0 %v2133
      %2243 = vmatprep.subr.mxu0 0.0
      %2244 = vmatpush1.msra.mxu0 %v2134
      %2245 = vmatprep.subr.mxu0 0.0
      %2246 = vmatpush1.msra.mxu0 %v2135
      %2247 = vmatprep.subr.mxu0 0.0
      %2248 = vmatpush1.msra.mxu0 0.0
      %2249 = vmatprep.subr.mxu0 0.0
      %2250 = vmatpush1.msra.mxu0 0.0
      %2251 = vmatprep.subr.mxu0 0.0
      %2252 = vmatpush1.msra.mxu0 0.0
      %2253 = vmatprep.subr.mxu0 0.0
      %2254 = vmatpush1.msra.mxu0 0.0
      %2255 = vmatprep.subr.mxu0 0.0
      %2256 = vmatpush1.msra.mxu0 0.0
      %2257 = vmatprep.subr.mxu0 0.0
      %2258 = vmatpush1.msra.mxu0 0.0
      %2259 = vmatprep.subr.mxu0 0.0
      %2260 = vmatpush1.msra.mxu0 0.0
      %2261 = vmatprep.subr.mxu0 0.0
      %2262 = vmatpush1.msra.mxu0 0.0
      %2263 = vmatprep.subr.mxu0 0.0
      %2264 = vmatpush1.msra.mxu0 0.0
      %2265 = vmatprep.subr.mxu0 0.0
      %2266 = vmatpush1.msra.mxu0 0.0
      %2267 = vmatprep.subr.mxu0 0.0
      %2268 = vmatpush1.msra.mxu0 0.0
      %2269 = vmatprep.subr.mxu0 0.0
      %2270 = vmatpush1.msra.mxu0 0.0
      %2271 = vmatprep.subr.mxu0 0.0
      %2272 = vmatpush1.msra.mxu0 0.0
      %2273 = vmatprep.subr.mxu0 0.0
      %2274 = vmatpush1.msra.mxu0 0.0
      %2275 = vmatprep.subr.mxu0 0.0
      %2276 = vmatpush1.msra.mxu0 0.0
      %2277 = vmatprep.subr.mxu0 0.0
      %2278 = vmatpush1.msra.mxu0 0.0
      %2279 = vmatprep.subr.mxu0 0.0
      %2280 = vmatpush1.msra.mxu0 0.0
      %2281 = vmatprep.subr.mxu0 0.0
      %2282 = vmatpush1.msra.mxu0 0.0
      %2283 = vmatprep.subr.mxu0 0.0
      %2284 = vmatpush1.msra.mxu0 0.0
      %2285 = vmatprep.subr.mxu0 0.0
      %2286 = vmatpush1.msra.mxu0 0.0
      %2287 = vmatprep.subr.mxu0 0.0
      %2288 = vmatpush1.msra.mxu0 0.0
      %2289 = vmatprep.subr.mxu0 0.0
      %2290 = vmatpush1.msra.mxu0 0.0
      %2291 = vmatprep.subr.mxu0 0.0
      %2292 = vmatpush1.msra.mxu0 0.0
      %2293 = vmatprep.subr.mxu0 0.0
      %2294 = vmatpush1.msra.mxu0 0.0
      %2295 = vmatprep.subr.mxu0 0.0
      %2296 = vmatpush1.msra.mxu0 0.0
      %2297 = vmatprep.subr.mxu0 0.0
      %2298 = vmatpush1.msra.mxu0 0.0
      %2299 = vmatprep.subr.mxu0 0.0
      %2300 = vmatpush1.msra.mxu0 0.0
      %2301 = vmatprep.subr.mxu0 0.0
      %2302 = vmatpush1.msra.mxu0 0.0
      %2303 = vmatprep.mubr.f32.mxu0 0.0
      %2304 = vmatmul.mubr.f32.gmra.mrb[0].mxu0 %v2144
      %v2305 = vpop.f32.mrb[0].mxu0
      %v2306 = vadd.f32 %v2141, %v2305
      %v2307 = vpop.f32.mrb[0].mxu0
      %2308 = vmatprep.mubr.f32.mxu0 0.0
      %2309 = vmatmul.mubr.f32.gmra.mrb[0].mxu0 %v2147
      %v2310 = vpop.f32.mrb[0].mxu0
      %v2311 = vadd.f32 %v2141, %v2310
      %v2312 = vpop.f32.mrb[0].mxu0
      %2313 = vmatprep.mubr.f32.mxu0 0.0
      %2314 = vmatmul.mubr.f32.gmra.mrb[0].mxu0 %v2150
      %v2315 = vpop.f32.mrb[0].mxu0
      %v2316 = vadd.f32 %v2141, %v2315
      %v2317 = vpop.f32.mrb[0].mxu0
      %2318 = vmatprep.mubr.f32.mxu0 0.0
      %2319 = vmatmul.mubr.f32.gmra.mrb[0].mxu0 %v2153
      %v2320 = vpop.f32.mrb[0].mxu0
      %v2321 = vadd.f32 %v2141, %v2320
      %v2322 = vpop.f32.mrb[0].mxu0
      %2323 = vmatprep.mubr.f32.mxu0 0.0
      %2324 = vmatmul.mubr.f32.gmra.mrb[0].mxu0 %v2156
      %v2325 = vpop.f32.mrb[0].mxu0
      %v2326 = vadd.f32 %v2141, %v2325
      %v2327 = vpop.f32.mrb[0].mxu0
      %2328 = vmatprep.mubr.f32.mxu0 0.0
      %2329 = vmatmul.mubr.f32.gmra.mrb[0].mxu0 %v2159
      %v2330 = vpop.f32.mrb[0].mxu0
      %v2331 = vadd.f32 %v2141, %v2330
      %v2332 = vpop.f32.mrb[0].mxu0
      %2333 = vmatprep.mubr.f32.mxu0 0.0
      %2334 = vmatmul.mubr.f32.gmra.mrb[0].mxu0 %v2162
      %v2335 = vpop.f32.mrb[0].mxu0
      %v2336 = vadd.f32 %v2141, %v2335
      %v2337 = vpop.f32.mrb[0].mxu0
      %2338 = vmatprep.mubr.f32.mxu0 0.0
      %2339 = vmatmul.mubr.f32.gmra.mrb[0].mxu0 %v2165
      %v2340 = vpop.f32.mrb[0].mxu0
      %v2341 = vadd.f32 %v2141, %v2340
      %v2342 = vpop.f32.mrb[0].mxu0
      %2343 = vmatprep.mubr.f32.mxu0 0.0
      %2344 = vmatmul.mubr.f32.gmra.mrb[0].mxu0 %v2168
      %v2345 = vpop.f32.mrb[0].mxu0
      %v2346 = vadd.f32 %v2141, %v2345
      %v2347 = vpop.f32.mrb[0].mxu0
      %2348 = vmatprep.mubr.f32.mxu0 0.0
      %2349 = vmatmul.mubr.f32.gmra.mrb[0].mxu0 %v2171
      %v2350 = vpop.f32.mrb[0].mxu0
      %v2351 = vadd.f32 %v2141, %v2350
      %v2352 = vpop.f32.mrb[0].mxu0
      %2353 = vmatprep.mubr.f32.mxu0 0.0
      %2354 = vmatmul.mubr.f32.gmra.mrb[0].mxu0 %v2174
      %v2355 = vpop.f32.mrb[0].mxu0
      %v2356 = vadd.f32 %v2141, %v2355
      %v2357 = vpop.f32.mrb[0].mxu0
      %2358 = vmatprep.mubr.f32.mxu0 0.0
      %2359 = vmatmul.mubr.f32.gmra.mrb[0].mxu0 %v2177
      %v2360 = vpop.f32.mrb[0].mxu0
      %v2361 = vadd.f32 %v2141, %v2360
      %v2362 = vpop.f32.mrb[0].mxu0
      %2363 = vmatprep.mubr.f32.mxu0 0.0
      %2364 = vmatmul.mubr.f32.gmra.mrb[0].mxu0 %v2180
      %v2365 = vpop.f32.mrb[0].mxu0
      %v2366 = vadd.f32 %v2141, %v2365
      %v2367 = vpop.f32.mrb[0].mxu0
      %2368 = vmatprep.mubr.f32.mxu0 0.0
      %2369 = vmatmul.mubr.f32.gmra.mrb[0].mxu0 %v2183
      %v2370 = vpop.f32.mrb[0].mxu0
      %v2371 = vadd.f32 %v2141, %v2370
      %v2372 = vpop.f32.mrb[0].mxu0
      %2373 = vmatprep.mubr.f32.mxu0 0.0
      %2374 = vmatmul.mubr.f32.gmra.mrb[0].mxu0 %v2186
      %v2375 = vpop.f32.mrb[0].mxu0
      %v2376 = vadd.f32 %v2141, %v2375
      %v2377 = vpop.f32.mrb[0].mxu0
      %2378 = vmatprep.mubr.f32.mxu0 0.0
      %2379 = vmatmul.mubr.f32.gmra.mrb[0].mxu0 %v2189
      %v2380 = vpop.f32.mrb[0].mxu0
      %v2381 = vadd.f32 %v2141, %v2380
      %v2382 = vpop.f32.mrb[0].mxu0
      %2383 = vmatprep.mubr.f32.mxu0 0.0
      %2384 = vmatmul.mubr.f32.gmra.mrb[0].mxu0 %v2192
      %v2385 = vpop.f32.mrb[0].mxu0
      %v2386 = vadd.f32 %v2141, %v2385
      %v2387 = vpop.f32.mrb[0].mxu0
      %2388 = vmatprep.mubr.f32.mxu0 0.0
      %2389 = vmatmul.mubr.f32.gmra.mrb[0].mxu0 %v2195
      %v2390 = vpop.f32.mrb[0].mxu0
      %v2391 = vadd.f32 %v2141, %v2390
      %v2392 = vpop.f32.mrb[0].mxu0
      %2393 = vmatprep.mubr.f32.mxu0 0.0
      %2394 = vmatmul.mubr.f32.gmra.mrb[0].mxu0 %v2198
      %v2395 = vpop.f32.mrb[0].mxu0
      %v2396 = vadd.f32 %v2141, %v2395
      %v2397 = vpop.f32.mrb[0].mxu0
      %2398 = vmatprep.mubr.f32.mxu0 0.0
      %2399 = vmatmul.mubr.f32.gmra.mrb[0].mxu0 %v2201
      %v2400 = vpop.f32.mrb[0].mxu0
      %v2401 = vadd.f32 %v2141, %v2400
      %v2402 = vpop.f32.mrb[0].mxu0
      %2403 = vmatprep.mubr.f32.mxu0 0.0
      %2404 = vmatmul.mubr.f32.gmra.mrb[0].mxu0 %v2204
      %v2405 = vpop.f32.mrb[0].mxu0
      %v2406 = vadd.f32 %v2141, %v2405
      %v2407 = vpop.f32.mrb[0].mxu0
      %2408 = vmatprep.mubr.f32.mxu0 0.0
      %2409 = vmatmul.mubr.f32.gmra.mrb[0].mxu0 %v2207
      %v2410 = vpop.f32.mrb[0].mxu0
      %v2411 = vadd.f32 %v2141, %v2410
      %v2412 = vpop.f32.mrb[0].mxu0
      %2413 = vmatprep.mubr.f32.mxu0 0.0
      %2414 = vmatmul.mubr.f32.gmra.mrb[0].mxu0 %v2210
      %v2415 = vpop.f32.mrb[0].mxu0
      %v2416 = vadd.f32 %v2141, %v2415
      %v2417 = vpop.f32.mrb[0].mxu0
      %2418 = vmatprep.mubr.f32.mxu0 0.0
      %2419 = vmatmul.mubr.f32.gmra.mrb[0].mxu0 %v2213
      %v2420 = vpop.f32.mrb[0].mxu0
      %v2421 = vadd.f32 %v2141, %v2420
      %v2422 = vpop.f32.mrb[0].mxu0
      %2423 = vmatprep.mubr.f32.mxu0 0.0
      %2424 = vmatmul.mubr.f32.gmra.mrb[0].mxu0 %v2216
      %v2425 = vpop.f32.mrb[0].mxu0
      %v2426 = vadd.f32 %v2141, %v2425
      %v2427 = vpop.f32.mrb[0].mxu0
      %2428 = vmatprep.mubr.f32.mxu0 0.0
      %2429 = vmatmul.mubr.f32.gmra.mrb[0].mxu0 %v2219
      %v2430 = vpop.f32.mrb[0].mxu0
      %v2431 = vadd.f32 %v2141, %v2430
      %v2432 = vpop.f32.mrb[0].mxu0
      %2433 = vmatprep.mubr.f32.mxu0 0.0
      %2434 = vmatmul.mubr.f32.gmra.mrb[0].mxu0 %v2222
      %v2435 = vpop.f32.mrb[0].mxu0
      %v2436 = vadd.f32 %v2141, %v2435
      %v2437 = vpop.f32.mrb[0].mxu0
      %2438 = vmatprep.mubr.f32.mxu0 0.0
      %2439 = vmatmul.mubr.f32.gmra.mrb[0].mxu0 %v2225
      %v2440 = vpop.f32.mrb[0].mxu0
      %v2441 = vadd.f32 %v2141, %v2440
      %v2442 = vpop.f32.mrb[0].mxu0
      %2443 = vmatprep.mubr.f32.mxu0 0.0
      %2444 = vmatmul.mubr.f32.gmra.mrb[0].mxu0 %v2228
      %v2445 = vpop.f32.mrb[0].mxu0
      %v2446 = vadd.f32 %v2141, %v2445
      %v2447 = vpop.f32.mrb[0].mxu0
      %2448 = vmatprep.mubr.f32.mxu0 0.0
      %2449 = vmatmul.mubr.f32.gmra.mrb[0].mxu0 %v2231
      %v2450 = vpop.f32.mrb[0].mxu0
      %v2451 = vadd.f32 %v2141, %v2450
      %v2452 = vpop.f32.mrb[0].mxu0
      %2453 = vmatprep.mubr.f32.mxu0 0.0
      %2454 = vmatmul.mubr.f32.gmra.mrb[0].mxu0 %v2234
      %v2455 = vpop.f32.mrb[0].mxu0
      %v2456 = vadd.f32 %v2141, %v2455
      %v2457 = vpop.f32.mrb[0].mxu0
      %2458 = vmatprep.mubr.f32.mxu0 0.0
      %2459 = vmatmul.mubr.f32.gmra.mrb[0].mxu0 %v2237
      %v2460 = vpop.f32.mrb[0].mxu0
      %v2461 = vadd.f32 %v2141, %v2460
      %v2462 = vpop.f32.mrb[0].mxu0
      %2463 = vdwg.mxu0
      %s2464 = sadd.s32 %s304, 1
      %s2465 = smul.u32 %s2464, 24
      %s2466 = scalar_lea.vmem %s292, %s2465
      %v2467 = vld [vmem:[%s2466 + $0x1] sm:$0xff]
      %v2468 = vld [vmem:[%s2466 + $0x9] sm:$0xff]
      %v2469 = vld [vmem:[%s2466 + $0x19] sm:$0xff]
      %v2470 = vld [vmem:[%s2466 + $0x21] sm:$0xff]
      %v2471 = vld [vmem:[%s2466 + $0x31] sm:$0xff]
      %v2472 = vld [vmem:[%s2466 + $0x39] sm:$0xff]
      %v2473 = vld [vmem:[%s2466 + $0x49] sm:$0xff]
      %v2474 = vld [vmem:[%s2466 + $0x51] sm:$0xff]
      %v2475 = vld [vmem:[%s2466 + $0x61] sm:$0xff]
      %v2476 = vld [vmem:[%s2466 + $0x69] sm:$0xff]
      %v2477 = vld [vmem:[%s2466 + $0x79] sm:$0xff]
      %v2478 = vld [vmem:[%s2466 + $0x81] sm:$0xff]
      %v2479 = vld [vmem:[%s2466 + $0x91] sm:$0xff]
      %v2480 = vld [vmem:[%s2466 + $0x99] sm:$0xff]
      %v2481 = vld [vmem:[%s2466 + $0xa9] sm:$0xff]
      %v2482 = vld [vmem:[%s2466 + $0xb1] sm:$0xff]
      %v2483 = vld [vmem:[%s2466 + $0xc1] sm:$0xff]
      %v2484 = vld [vmem:[%s2466 + $0xc9] sm:$0xff]
      %v2485 = vld [vmem:[%s2466 + $0xd9] sm:$0xff]
      %v2486 = vld [vmem:[%s2466 + $0xe1] sm:$0xff]
      %v2487 = vld [vmem:[%s2466 + $0xf1] sm:$0xff]
      %v2488 = vld [vmem:[%s2466 + $0xf9] sm:$0xff]
      %v2489 = vld [vmem:[%s2466 + $0x109] sm:$0xff]
      %v2490 = vld [vmem:[%s2466 + $0x111] sm:$0xff]
      %v2491 = vld [vmem:[%s2466 + $0x121] sm:$0xff]
      %v2492 = vld [vmem:[%s2466 + $0x129] sm:$0xff]
      %v2493 = vld [vmem:[%s2466 + $0x139] sm:$0xff]
      %v2494 = vld [vmem:[%s2466 + $0x141] sm:$0xff]
      %v2495 = vld [vmem:[%s2466 + $0x151] sm:$0xff]
      %v2496 = vld [vmem:[%s2466 + $0x159] sm:$0xff]
      %v2497 = vld [vmem:[%s2466 + $0x169] sm:$0xff]
      %v2498 = vld [vmem:[%s2466 + $0x171] sm:$0xff]
      %v2499 = vadd.f32 %v2306, %v2467
      %v2500 = vadd.f32 %v2311, %v2468
      %v2501 = vadd.f32 %v2316, %v2469
      %v2502 = vadd.f32 %v2321, %v2470
      %v2503 = vadd.f32 %v2326, %v2471
      %v2504 = vadd.f32 %v2331, %v2472
      %v2505 = vadd.f32 %v2336, %v2473
      %v2506 = vadd.f32 %v2341, %v2474
      %v2507 = vadd.f32 %v2346, %v2475
      %v2508 = vadd.f32 %v2351, %v2476
      %v2509 = vadd.f32 %v2356, %v2477
      %v2510 = vadd.f32 %v2361, %v2478
      %v2511 = vadd.f32 %v2366, %v2479
      %v2512 = vadd.f32 %v2371, %v2480
      %v2513 = vadd.f32 %v2376, %v2481
      %v2514 = vadd.f32 %v2381, %v2482
      %v2515 = vadd.f32 %v2386, %v2483
      %v2516 = vadd.f32 %v2391, %v2484
      %v2517 = vadd.f32 %v2396, %v2485
      %v2518 = vadd.f32 %v2401, %v2486
      %v2519 = vadd.f32 %v2406, %v2487
      %v2520 = vadd.f32 %v2411, %v2488
      %v2521 = vadd.f32 %v2416, %v2489
      %v2522 = vadd.f32 %v2421, %v2490
      %v2523 = vadd.f32 %v2426, %v2491
      %v2524 = vadd.f32 %v2431, %v2492
      %v2525 = vadd.f32 %v2436, %v2493
      %v2526 = vadd.f32 %v2441, %v2494
      %v2527 = vadd.f32 %v2446, %v2495
      %v2528 = vadd.f32 %v2451, %v2496
      %v2529 = vadd.f32 %v2456, %v2497
      %v2530 = vadd.f32 %v2461, %v2498
      %2531 = vst.msk [vmem:[%s302] sm:$0xff] %vm369, %v2499
      %2532 = vst.msk [vmem:[%s302 + $0x8] sm:$0xff] %vm369, %v2500
      %2533 = vst.msk [vmem:[%s302 + $0x10] sm:$0xff] %vm369, %v2501
      %2534 = vst.msk [vmem:[%s302 + $0x18] sm:$0xff] %vm369, %v2502
      %2535 = vst.msk [vmem:[%s302 + $0x20] sm:$0xff] %vm369, %v2503
      %2536 = vst.msk [vmem:[%s302 + $0x28] sm:$0xff] %vm369, %v2504
      %2537 = vst.msk [vmem:[%s302 + $0x30] sm:$0xff] %vm369, %v2505
      %2538 = vst.msk [vmem:[%s302 + $0x38] sm:$0xff] %vm369, %v2506
      %2539 = vst.msk [vmem:[%s302 + $0x40] sm:$0xff] %vm369, %v2507
      %2540 = vst.msk [vmem:[%s302 + $0x48] sm:$0xff] %vm369, %v2508
      %2541 = vst.msk [vmem:[%s302 + $0x50] sm:$0xff] %vm369, %v2509
      %2542 = vst.msk [vmem:[%s302 + $0x58] sm:$0xff] %vm369, %v2510
      %2543 = vst.msk [vmem:[%s302 + $0x60] sm:$0xff] %vm369, %v2511
      %2544 = vst.msk [vmem:[%s302 + $0x68] sm:$0xff] %vm369, %v2512
      %2545 = vst.msk [vmem:[%s302 + $0x70] sm:$0xff] %vm369, %v2513
      %2546 = vst.msk [vmem:[%s302 + $0x78] sm:$0xff] %vm369, %v2514
      %2547 = vst.msk [vmem:[%s302 + $0x80] sm:$0xff] %vm369, %v2515
      %2548 = vst.msk [vmem:[%s302 + $0x88] sm:$0xff] %vm369, %v2516
      %2549 = vst.msk [vmem:[%s302 + $0x90] sm:$0xff] %vm369, %v2517
      %2550 = vst.msk [vmem:[%s302 + $0x98] sm:$0xff] %vm369, %v2518
      %2551 = vst.msk [vmem:[%s302 + $0xa0] sm:$0xff] %vm369, %v2519
      %2552 = vst.msk [vmem:[%s302 + $0xa8] sm:$0xff] %vm369, %v2520
      %2553 = vst.msk [vmem:[%s302 + $0xb0] sm:$0xff] %vm369, %v2521
      %2554 = vst.msk [vmem:[%s302 + $0xb8] sm:$0xff] %vm369, %v2522
      %2555 = vst.msk [vmem:[%s302 + $0xc0] sm:$0xff] %vm369, %v2523
      %2556 = vst.msk [vmem:[%s302 + $0xc8] sm:$0xff] %vm369, %v2524
      %2557 = vst.msk [vmem:[%s302 + $0xd0] sm:$0xff] %vm369, %v2525
      %2558 = vst.msk [vmem:[%s302 + $0xd8] sm:$0xff] %vm369, %v2526
      %2559 = vst.msk [vmem:[%s302 + $0xe0] sm:$0xff] %vm369, %v2527
      %2560 = vst.msk [vmem:[%s302 + $0xe8] sm:$0xff] %vm369, %v2528
      %2561 = vst.msk [vmem:[%s302 + $0xf0] sm:$0xff] %vm369, %v2529
      %2562 = vst.msk [vmem:[%s302 + $0xf8] sm:$0xff] %vm369, %v2530
      %s2563 = smul.u32 16, %s23
      %p2564 = scmp.lt.s32.totalorder %s22, 1
      %s2565 = scalar_select %p2564, %s22, 1
      %p2566 = scmp.lt.s32.totalorder %s2563, 15
      %s2567 = scalar_select %p2566, %s2563, 15
      %s2568 = smul.addr %s2567, 2
      %s2569 = smul.addr %s2565, 32
      %s2570 = sadd.s32 %s2568, %s2569
      %s2571 = smul.addr %s2570, 8
      %s2572 = scalar_lea.vmem %s7, %s2571
      // Predicated region
      $region57: #{tpu_custom_call.1} parent=47 // pred_check
        %p2573 = pneg %p202
      $region58: #{tpu_custom_call.1} parent=47 // pred_check_branch
        %2575 = sbr.rel (%p2573) target = $region60
      $region59: #{tpu_custom_call.1} parent=47 // pred_region
        %s2576 = smul.u32 16, %s23
      $region60: #{tpu_custom_call.1} parent=47 // pred_fallthru
        _
    $region48: #{tpu_custom_call.1} parent=5 // pred_fallthru
      _
    %p2577 = scmp.le.s32.totalorder 2, %s13
    // Predicated region
    $region61: #{tpu_custom_call.1} parent=5 // pred_check
      %p2578 = pneg %p2577
    $region62: #{tpu_custom_call.1} parent=5 // pred_check_branch
      %2580 = sbr.rel (%p2578) target = $region64
    $region63: #{tpu_custom_call.1} parent=5 // pred_region
      %s2581 = ssub.s32 %s13, 2
      // Predicated region
      $region65: #{tpu_custom_call.1} parent=63 // pred_check
        %p2582 = pneg %p208
      $region66: #{tpu_custom_call.1} parent=63 // pred_check_branch
        %2584 = sbr.rel (%p2582) target = $region68
      $region67: #{tpu_custom_call.1} parent=63 // pred_region
        %s2585 = smul.u32 16, %s25
        %p2586 = scmp.lt.s32.totalorder %s24, 1
        %s2587 = scalar_select %p2586, %s24, 1
        %p2588 = scmp.lt.s32.totalorder %s2585, 15
        %s2589 = scalar_select %p2588, %s2585, 15
        %s2590 = smul.addr %s2589, 2
        %s2591 = smul.addr %s2587, 32
        %s2592 = sadd.s32 %s2590, %s2591
        %s2593 = smul.addr %s2592, 8
        %s2594 = scalar_lea.vmem %s7, %s2593
      $region68: #{tpu_custom_call.1} parent=63 // pred_fallthru
        _
    $region64: #{tpu_custom_call.1} parent=5 // pred_fallthru
      _
  $region6: #{tpu_custom_call.1} parent=0 // loop_footer
    %s17 = sadd.s32 1, %s13
  $region7: #{tpu_custom_call.1} parent=0 // loop_footer_branch
    %12 = sbr.rel target = $region3
  $region8: #{tpu_custom_call.1} parent=0 // loop_exit
    _

</llo_original>
